<compile_context>
chip_gen: v7x
topology: tpu7x:2x2x1
jax: 0.10.0
libtpu: 0.0.40
codegen_flags: <defaults>
</compile_context>

<pallas_src>
import functools

import numpy as np

import jax
import jax.numpy as jnp
from jax.experimental import pallas as pl
from jax.experimental.pallas import tpu as pltpu


_HEAD_PAD = 128   # lane-dense padded width of the fused [value | advantage] output
_C1, _C2, _C3 = 32, 64, 64   # conv output channel counts (fixed by the module)


# ---------------------------------------------------------------------------
# Shape bookkeeping
# ---------------------------------------------------------------------------
def _conv_stack_dims(h, w):
    """Spatial sizes through conv1(k4,s4) -> conv2(k2,s2) -> conv3(k2,s1) -> maxpool(2)."""
    h1, w1 = (h - 4) // 4 + 1, (w - 4) // 4 + 1
    h2, w2 = (h1 - 2) // 2 + 1, (w1 - 2) // 2 + 1
    h3, w3 = h2 - 1, w2 - 1
    hp, wp = h3 // 2, w3 // 2
    return (h1, w1), (h2, w2), (h3, w3), (hp, wp)


def _conv1_row_index(batch, h1, w1, hp, wp):
    """Static row index (with duplication) into the full conv1-patch matrix.

    Row order (outer -> inner):
      conv2 tap (u2,v2) | conv3 tap (u3,v3) | pool tap (i,j) | hp | wp | b
    Row (..., ph, pw, b) of tap block (u2,v2,u3,v3,i,j) holds the conv1 output
    position (h1, w1) = (4*ph + 2*i + 2*u3 + u2, 4*pw + 2*j + 2*v3 + v2).
    """
    idx = []
    for u2 in range(2):
        for v2 in range(2):
            for u3 in range(2):
                for v3 in range(2):
                    for i in range(2):
                        for j in range(2):
                            for ph in range(hp):
                                for pw in range(wp):
                                    for b in range(batch):
                                        r = 4 * ph + 2 * i + 2 * u3 + u2
                                        s = 4 * pw + 2 * j + 2 * v3 + v2
                                        idx.append((b * h1 + r) * w1 + s)
    return np.asarray(idx, dtype=np.int32)


# ---------------------------------------------------------------------------
# The fused Pallas kernel
# ---------------------------------------------------------------------------
def _ddqn_fused_kernel(p1_ref, w1_ref, b1_ref, w2_ref, b2_ref, w3_ref, b3_ref,
                       wl1_ref, bl1_ref, wl2_ref, bl2_ref, wh_ref, bh_ref,
                       out_ref, *, batch, n_spatial, c1, c2, c3):
    """Whole DDQN forward on VMEM-resident data (single grid step).

    Row layouts (all contiguous blocks by construction of p1):
      a1 rows : [conv2 tap (4)] x [conv3 tap (4)] x [pool tap (4)] x [hp,wp,b]
      a2 rows : [conv3 tap (4)] x [pool tap (4)] x [hp,wp,b]
      a3 rows : [pool tap (4)] x [hp,wp,b]
      pooled  : [hp,wp,b]
    """
    n_pool = n_spatial * batch        # rows of pooled matrix
    n3 = 4 * n_pool                   # rows of a3
    n2 = 4 * n3                       # rows of a2

    # ---- conv1: im2col patches @ W1 + b1, ReLU -----------------------------
    a1 = jnp.dot(p1_ref[...], w1_ref[...], preferred_element_type=jnp.float32)
    a1 = jnp.maximum(a1 + b1_ref[...], 0.0)                          # (4*n2, c1)

    # ---- conv2 (k=2, s=2): 4 accumulated per-tap matmuls -------------------
    acc = jnp.dot(a1[0:n2], w2_ref[0:c1, :], preferred_element_type=jnp.float32)
    for t in range(1, 4):
        acc = acc + jnp.dot(a1[t * n2:(t + 1) * n2],
                            w2_ref[t * c1:(t + 1) * c1, :],
                            preferred_element_type=jnp.float32)
    a2 = jnp.maximum(acc + b2_ref[...], 0.0)                         # (n2, c2)

    # ---- conv3 (k=2, s=1): 4 accumulated per-tap matmuls, NO ReLU ----------
    acc = jnp.dot(a2[0:n3], w3_ref[0:c2, :], preferred_element_type=jnp.float32)
    for t in range(1, 4):
        acc = acc + jnp.dot(a2[t * n3:(t + 1) * n3],
                            w3_ref[t * c2:(t + 1) * c2, :],
                            preferred_element_type=jnp.float32)
    a3 = acc + b3_ref[...]                                           # (n3, c3)

    # ---- MaxPool2d(2): elementwise max of the 4 pool-tap row blocks --------
    pooled = a3[0:n_pool]
    for t in range(1, 4):
        pooled = jnp.maximum(pooled, a3[t * n_pool:(t + 1) * n_pool])  # (n_pool, c3)

    # ---- line_1 (flatten folded into per-spatial-position weight blocks) ---
    acc = jnp.dot(pooled[0:batch], wl1_ref[0:c3, :],
                  preferred_element_type=jnp.float32)
    for q in range(1, n_spatial):
        acc = acc + jnp.dot(pooled[q * batch:(q + 1) * batch],
                            wl1_ref[q * c3:(q + 1) * c3, :],
                            preferred_element_type=jnp.float32)
    h = jnp.maximum(acc + bl1_ref[...], 0.0)                         # (batch, 512)

    # ---- line_2 + fused [value | advantage] NoisyNet heads -----------------
    h = jnp.maximum(
        jnp.dot(h, wl2_ref[...], preferred_element_type=jnp.float32) + bl2_ref[...],
        0.0)                                                         # (batch, out_dim)
    out = jnp.dot(h, wh_ref[...], preferred_element_type=jnp.float32) + bh_ref[...]
    out_ref[...] = out.astype(out_ref.dtype)                         # (batch, 128)


# ---------------------------------------------------------------------------
# Forward wrapper (one pallas_call; only cheap XLA data-movement before it)
# ---------------------------------------------------------------------------
def ddqn_forward(params, x, n_actions=12):
    """x: NCHW float32 (PyTorch layout). Returns (value [B,1], advantage [B,n])."""
    B, C, H, W = x.shape
    (H1, W1), _, _, (Hp, Wp) = _conv_stack_dims(H, W)
    assert Hp >= 1 and Wp >= 1, "input spatial size too small for the conv/pool stack"
    n_spatial = Hp * Wp

    # conv1 im2col (stride == kernel == 4 => pure space-to-depth) in XLA, then a
    # single static row gather that also folds in the NCHW->NHWC layout change
    # and the duplicated block ordering the fused kernel expects.
    xc = x.transpose(0, 2, 3, 1)[:, :4 * H1, :4 * W1, :]             # (B,4H1,4W1,C)
    p_full = (xc.reshape(B, H1, 4, W1, 4, C)
                .transpose(0, 1, 3, 2, 4, 5)
                .reshape(B * H1 * W1, 16 * C))                       # rows (b,h1,w1)
    row_idx = _conv1_row_index(B, H1, W1, Hp, Wp)
    p1 = jnp.take(p_full, jnp.asarray(row_idx), axis=0)              # (64*ns*B, 16C)

    operands = (p1,
                params["conv1_w"], params["conv1_b"],
                params["conv2_w"], params["conv2_b"],
                params["conv3_w"], params["conv3_b"],
                params["line1_w"], params["line1_b"],
                params["line2_w"], params["line2_b"],
                params["head_w"], params["head_b"])

    m1, k1 = p1.shape
    m2, m3 = 16 * n_spatial * B, 4 * n_spatial * B
    flat = _C3 * n_spatial
    out_dim = params["line2_w"].shape[1]
    flops = 2 * (m1 * k1 * _C1 + m2 * (4 * _C1) * _C2 + m3 * (4 * _C2) * _C3
                 + B * flat * 512 + B * 512 * out_dim + B * out_dim * _HEAD_PAD)
    bytes_accessed = 4 * (sum(int(np.prod(op.shape)) for op in operands)
                          + B * _HEAD_PAD)

    out = pl.pallas_call(
        functools.partial(_ddqn_fused_kernel, batch=B, n_spatial=n_spatial,
                          c1=_C1, c2=_C2, c3=_C3),
        out_shape=jax.ShapeDtypeStruct((B, _HEAD_PAD), jnp.float32),
        grid=(1,),
        in_specs=[pl.BlockSpec(op.shape, lambda i: (0, 0)) for op in operands],
        out_specs=pl.BlockSpec((B, _HEAD_PAD), lambda i: (0, 0)),
        compiler_params=pltpu.CompilerParams(
            dimension_semantics=("arbitrary",)),
        cost_estimate=pl.CostEstimate(flops=flops, transcendentals=0,
                                      bytes_accessed=bytes_accessed),
    )(*operands)

    value = out[:, :1]
    advantage = out[:, 1:1 + n_actions]
    return value, advantage


# ---------------------------------------------------------------------------
# Deterministic parameter construction (PyTorch-module-compatible shapes, all
# weights stored pre-transposed / pre-reshaped for the fused kernel, f32)
# ---------------------------------------------------------------------------
def _kaiming_conv(key, out_c, in_c, k):
    """Conv2d: kaiming_normal_(fan_out) weight (as in the module), default
    uniform bias. Stored as [k*k*in_c, out_c] with row order (kh, kw, c)."""
    kw_, kb_ = jax.random.split(key)
    fan_out = out_c * k * k
    std = (2.0 / fan_out) ** 0.5
    w = jax.random.normal(kw_, (out_c, in_c, k, k), jnp.float32) * std
    w_mat = w.transpose(2, 3, 1, 0).reshape(k * k * in_c, out_c)
    bound = (in_c * k * k) ** -0.5
    b = jax.random.uniform(kb_, (out_c,), jnp.float32, -bound, bound)
    return w_mat, b.reshape(1, out_c)


def _linear_default(key, in_f, out_f):
    """nn.Linear default init, stored pre-transposed as [in_f, out_f]."""
    bound = in_f ** (-0.5)
    kw_, kb_ = jax.random.split(key)
    w = jax.random.uniform(kw_, (out_f, in_f), jnp.float32, -bound, bound)
    b = jax.random.uniform(kb_, (out_f,), jnp.float32, -bound, bound)
    return w.T, b.reshape(1, out_f)


def _noisy_effective(key, in_f, out_f, sigma=0.5):
    """NoisyNetLayer (training, sample_noise=True): w = sig*outer(eo,ei) + mu."""
    bound = in_f ** (-0.5)
    k1, k2, k3, k4 = jax.random.split(key, 4)
    mu_w = jax.random.uniform(k1, (out_f, in_f), jnp.float32, -bound, bound)
    mu_b = jax.random.uniform(k2, (out_f,), jnp.float32, -bound, bound)
    sig = sigma * bound
    f = lambda e: jnp.sign(e) * jnp.sqrt(jnp.abs(e))
    eps_in = f(jax.random.normal(k3, (in_f,), jnp.float32))
    eps_out = f(jax.random.normal(k4, (out_f,), jnp.float32))
    w = sig * jnp.outer(eps_out, eps_in) + mu_w       # [out_f, in_f]
    b = sig * eps_out + mu_b
    return w, b


def init_ddqn_params(key, input_dim, output_dim=256, n_actions=12):
    c, h, w = input_dim
    _, _, _, (hp, wp) = _conv_stack_dims(h, w)
    assert hp >= 1 and wp >= 1, "input spatial size too small for the conv/pool stack"
    n_spatial = hp * wp
    flat = _C3 * n_spatial

    keys = jax.random.split(key, 7)
    p = {}
    p["conv1_w"], p["conv1_b"] = _kaiming_conv(keys[0], _C1, c, 4)
    p["conv2_w"], p["conv2_b"] = _kaiming_conv(keys[1], _C2, _C1, 2)
    p["conv3_w"], p["conv3_b"] = _kaiming_conv(keys[2], _C3, _C2, 2)

    l1_w, p["line1_b"] = _linear_default(keys[3], flat, 512)
    # Reorder line_1 weight rows from PyTorch's NCHW flatten order (c, hp, wp)
    # to the kernel's per-spatial-position block order (hp, wp, c).
    perm = np.asarray([cc * n_spatial + q
                       for q in range(n_spatial) for cc in range(_C3)],
                      dtype=np.int32)
    p["line1_w"] = l1_w[perm]

    p["line2_w"], p["line2_b"] = _linear_default(keys[4], 512, output_dim)

    # NoisyNet heads: effective weights precomputed, concatenated into one
    # lane-dense [output_dim, 128] matrix (value col 0, advantage cols 1..12).
    v_w, v_b = _noisy_effective(keys[5], output_dim, 1)
    a_w, a_b = _noisy_effective(keys[6], output_dim, n_actions)
    head_w = jnp.concatenate([v_w, a_w], axis=0).T            # [out_dim, 1+n]
    head_b = jnp.concatenate([v_b, a_b], axis=0)              # [1+n]
    pad = _HEAD_PAD - (1 + n_actions)
    p["head_w"] = jnp.pad(head_w, ((0, 0), (0, pad)))
    p["head_b"] = jnp.pad(head_b, (0, pad)).reshape(1, _HEAD_PAD)
    return p


if __name__ == "__main__":
    key = jax.random.PRNGKey(0)
    k_param, k_input = jax.random.split(key)

    # (c, h, w) = (4, 32, 32): the smallest "nice" spatial size that survives
    # the conv/pool stack (a 16x16 input collapses to zero after the max-pool).
    B, C, H, W = 2, 4, 32, 32
    params = init_ddqn_params(k_param, (C, H, W), output_dim=256, n_actions=12)
    x = jax.random.normal(k_input, (B, C, H, W), dtype=jnp.float32)

    fwd = jax.jit(ddqn_forward)
    value, advantage = fwd(params, x)
    jax.block_until_ready((value, advantage))
    assert value.shape == (B, 1) and advantage.shape == (B, 12)
    print("KERNEL_OK")
</pallas_src>

<mosaic_0001>
module attributes {stable_mosaic.version = 11 : i64} {
  func.func @_ddqn_fused_kernel(%arg0: i32, %arg1: memref<128x64xf32, #tpu.memory_space<vmem>>, %arg2: memref<64x32xf32, #tpu.memory_space<vmem>>, %arg3: memref<1x32xf32, #tpu.memory_space<vmem>>, %arg4: memref<128x64xf32, #tpu.memory_space<vmem>>, %arg5: memref<1x64xf32, #tpu.memory_space<vmem>>, %arg6: memref<256x64xf32, #tpu.memory_space<vmem>>, %arg7: memref<1x64xf32, #tpu.memory_space<vmem>>, %arg8: memref<64x512xf32, #tpu.memory_space<vmem>>, %arg9: memref<1x512xf32, #tpu.memory_space<vmem>>, %arg10: memref<512x256xf32, #tpu.memory_space<vmem>>, %arg11: memref<1x256xf32, #tpu.memory_space<vmem>>, %arg12: memref<256x128xf32, #tpu.memory_space<vmem>>, %arg13: memref<1x128xf32, #tpu.memory_space<vmem>>, %arg14: memref<2x128xf32, #tpu.memory_space<vmem>>) attributes {dimension_semantics = [#tpu.dimension_semantics<arbitrary>], iteration_bounds = array<i64: 1>, scalar_prefetch = 0 : i64, scratch_operands = 0 : i64, tpu.core_type = #tpu.core_type<tc>, window_params = [{pipeline_mode = #tpu.pipeline_mode<synchronous>, transform_indices = @transform_0, window_bounds = array<i64: 128, 64>}, {pipeline_mode = #tpu.pipeline_mode<synchronous>, transform_indices = @transform_1, window_bounds = array<i64: 64, 32>}, {pipeline_mode = #tpu.pipeline_mode<synchronous>, transform_indices = @transform_2, window_bounds = array<i64: 1, 32>}, {pipeline_mode = #tpu.pipeline_mode<synchronous>, transform_indices = @transform_3, window_bounds = array<i64: 128, 64>}, {pipeline_mode = #tpu.pipeline_mode<synchronous>, transform_indices = @transform_4, window_bounds = array<i64: 1, 64>}, {pipeline_mode = #tpu.pipeline_mode<synchronous>, transform_indices = @transform_5, window_bounds = array<i64: 256, 64>}, {pipeline_mode = #tpu.pipeline_mode<synchronous>, transform_indices = @transform_6, window_bounds = array<i64: 1, 64>}, {pipeline_mode = #tpu.pipeline_mode<synchronous>, transform_indices = @transform_7, window_bounds = array<i64: 64, 512>}, {pipeline_mode = #tpu.pipeline_mode<synchronous>, transform_indices = @transform_8, window_bounds = array<i64: 1, 512>}, {pipeline_mode = #tpu.pipeline_mode<synchronous>, transform_indices = @transform_9, window_bounds = array<i64: 512, 256>}, {pipeline_mode = #tpu.pipeline_mode<synchronous>, transform_indices = @transform_10, window_bounds = array<i64: 1, 256>}, {pipeline_mode = #tpu.pipeline_mode<synchronous>, transform_indices = @transform_11, window_bounds = array<i64: 256, 128>}, {pipeline_mode = #tpu.pipeline_mode<synchronous>, transform_indices = @transform_12, window_bounds = array<i64: 1, 128>}, {pipeline_mode = #tpu.pipeline_mode<synchronous>, transform_indices = @transform_13, window_bounds = array<i64: 2, 128>}]} {
    %c0 = arith.constant 0 : index
    %c0_0 = arith.constant 0 : index
    %0 = vector.load %arg1[%c0, %c0_0] : memref<128x64xf32, #tpu.memory_space<vmem>>, vector<128x64xf32>
    %c0_1 = arith.constant 0 : index
    %c0_2 = arith.constant 0 : index
    %1 = vector.load %arg2[%c0_1, %c0_2] : memref<64x32xf32, #tpu.memory_space<vmem>>, vector<64x32xf32>
    %cst = arith.constant dense<0.000000e+00> : vector<128x32xf32>
    %2 = tpu.matmul %0, %1, %cst {dimension_numbers = #tpu.dot_dimension_numbers<[1], [0], [0], [1], [0, 0, 1, 1], [], []>} : vector<128x64xf32>, vector<64x32xf32>, vector<128x32xf32> -> vector<128x32xf32>
    %c0_3 = arith.constant 0 : index
    %c0_4 = arith.constant 0 : index
    %3 = vector.load %arg3[%c0_3, %c0_4] : memref<1x32xf32, #tpu.memory_space<vmem>>, vector<1x32xf32>
    %4 = vector.broadcast %3 : vector<1x32xf32> to vector<128x32xf32>
    %5 = arith.addf %2, %4 : vector<128x32xf32>
    %cst_5 = arith.constant 0.000000e+00 : f32
    %6 = vector.broadcast %cst_5 : f32 to vector<128x32xf32>
    %7 = arith.maximumf %5, %6 : vector<128x32xf32>
    %8 = vector.extract_strided_slice %7 {offsets = [0, 0], sizes = [32, 32], strides = [1, 1]} : vector<128x32xf32> to vector<32x32xf32>
    %c0_6 = arith.constant 0 : index
    %c0_7 = arith.constant 0 : index
    %9 = vector.load %arg4[%c0_6, %c0_7] : memref<128x64xf32, #tpu.memory_space<vmem>>, vector<32x64xf32>
    %cst_8 = arith.constant dense<0.000000e+00> : vector<32x64xf32>
    %10 = tpu.matmul %8, %9, %cst_8 {dimension_numbers = #tpu.dot_dimension_numbers<[1], [0], [0], [1], [0, 0, 1, 1], [], []>} : vector<32x32xf32>, vector<32x64xf32>, vector<32x64xf32> -> vector<32x64xf32>
    %11 = vector.extract_strided_slice %7 {offsets = [32, 0], sizes = [32, 32], strides = [1, 1]} : vector<128x32xf32> to vector<32x32xf32>
    %c32 = arith.constant 32 : index
    %c0_9 = arith.constant 0 : index
    %12 = vector.load %arg4[%c32, %c0_9] : memref<128x64xf32, #tpu.memory_space<vmem>>, vector<32x64xf32>
    %cst_10 = arith.constant dense<0.000000e+00> : vector<32x64xf32>
    %13 = tpu.matmul %11, %12, %cst_10 {dimension_numbers = #tpu.dot_dimension_numbers<[1], [0], [0], [1], [0, 0, 1, 1], [], []>} : vector<32x32xf32>, vector<32x64xf32>, vector<32x64xf32> -> vector<32x64xf32>
    %14 = arith.addf %10, %13 : vector<32x64xf32>
    %15 = vector.extract_strided_slice %7 {offsets = [64, 0], sizes = [32, 32], strides = [1, 1]} : vector<128x32xf32> to vector<32x32xf32>
    %c64 = arith.constant 64 : index
    %c0_11 = arith.constant 0 : index
    %16 = vector.load %arg4[%c64, %c0_11] : memref<128x64xf32, #tpu.memory_space<vmem>>, vector<32x64xf32>
    %cst_12 = arith.constant dense<0.000000e+00> : vector<32x64xf32>
    %17 = tpu.matmul %15, %16, %cst_12 {dimension_numbers = #tpu.dot_dimension_numbers<[1], [0], [0], [1], [0, 0, 1, 1], [], []>} : vector<32x32xf32>, vector<32x64xf32>, vector<32x64xf32> -> vector<32x64xf32>
    %18 = arith.addf %14, %17 : vector<32x64xf32>
    %19 = vector.extract_strided_slice %7 {offsets = [96, 0], sizes = [32, 32], strides = [1, 1]} : vector<128x32xf32> to vector<32x32xf32>
    %c96 = arith.constant 96 : index
    %c0_13 = arith.constant 0 : index
    %20 = vector.load %arg4[%c96, %c0_13] : memref<128x64xf32, #tpu.memory_space<vmem>>, vector<32x64xf32>
    %cst_14 = arith.constant dense<0.000000e+00> : vector<32x64xf32>
    %21 = tpu.matmul %19, %20, %cst_14 {dimension_numbers = #tpu.dot_dimension_numbers<[1], [0], [0], [1], [0, 0, 1, 1], [], []>} : vector<32x32xf32>, vector<32x64xf32>, vector<32x64xf32> -> vector<32x64xf32>
    %22 = arith.addf %18, %21 : vector<32x64xf32>
    %c0_15 = arith.constant 0 : index
    %c0_16 = arith.constant 0 : index
    %23 = vector.load %arg5[%c0_15, %c0_16] : memref<1x64xf32, #tpu.memory_space<vmem>>, vector<1x64xf32>
    %24 = vector.broadcast %23 : vector<1x64xf32> to vector<32x64xf32>
    %25 = arith.addf %22, %24 : vector<32x64xf32>
    %cst_17 = arith.constant 0.000000e+00 : f32
    %26 = vector.broadcast %cst_17 : f32 to vector<32x64xf32>
    %27 = arith.maximumf %25, %26 : vector<32x64xf32>
    %28 = vector.extract_strided_slice %27 {offsets = [0, 0], sizes = [8, 64], strides = [1, 1]} : vector<32x64xf32> to vector<8x64xf32>
    %c0_18 = arith.constant 0 : index
    %c0_19 = arith.constant 0 : index
    %29 = vector.load %arg6[%c0_18, %c0_19] : memref<256x64xf32, #tpu.memory_space<vmem>>, vector<64x64xf32>
    %cst_20 = arith.constant dense<0.000000e+00> : vector<8x64xf32>
    %30 = tpu.matmul %28, %29, %cst_20 {dimension_numbers = #tpu.dot_dimension_numbers<[1], [0], [0], [1], [0, 0, 1, 1], [], []>} : vector<8x64xf32>, vector<64x64xf32>, vector<8x64xf32> -> vector<8x64xf32>
    %31 = vector.extract_strided_slice %27 {offsets = [8, 0], sizes = [8, 64], strides = [1, 1]} : vector<32x64xf32> to vector<8x64xf32>
    %c64_21 = arith.constant 64 : index
    %c0_22 = arith.constant 0 : index
    %32 = vector.load %arg6[%c64_21, %c0_22] : memref<256x64xf32, #tpu.memory_space<vmem>>, vector<64x64xf32>
    %cst_23 = arith.constant dense<0.000000e+00> : vector<8x64xf32>
    %33 = tpu.matmul %31, %32, %cst_23 {dimension_numbers = #tpu.dot_dimension_numbers<[1], [0], [0], [1], [0, 0, 1, 1], [], []>} : vector<8x64xf32>, vector<64x64xf32>, vector<8x64xf32> -> vector<8x64xf32>
    %34 = arith.addf %30, %33 : vector<8x64xf32>
    %35 = vector.extract_strided_slice %27 {offsets = [16, 0], sizes = [8, 64], strides = [1, 1]} : vector<32x64xf32> to vector<8x64xf32>
    %c128 = arith.constant 128 : index
    %c0_24 = arith.constant 0 : index
    %36 = vector.load %arg6[%c128, %c0_24] : memref<256x64xf32, #tpu.memory_space<vmem>>, vector<64x64xf32>
    %cst_25 = arith.constant dense<0.000000e+00> : vector<8x64xf32>
    %37 = tpu.matmul %35, %36, %cst_25 {dimension_numbers = #tpu.dot_dimension_numbers<[1], [0], [0], [1], [0, 0, 1, 1], [], []>} : vector<8x64xf32>, vector<64x64xf32>, vector<8x64xf32> -> vector<8x64xf32>
    %38 = arith.addf %34, %37 : vector<8x64xf32>
    %39 = vector.extract_strided_slice %27 {offsets = [24, 0], sizes = [8, 64], strides = [1, 1]} : vector<32x64xf32> to vector<8x64xf32>
    %c192 = arith.constant 192 : index
    %c0_26 = arith.constant 0 : index
    %40 = vector.load %arg6[%c192, %c0_26] : memref<256x64xf32, #tpu.memory_space<vmem>>, vector<64x64xf32>
    %cst_27 = arith.constant dense<0.000000e+00> : vector<8x64xf32>
    %41 = tpu.matmul %39, %40, %cst_27 {dimension_numbers = #tpu.dot_dimension_numbers<[1], [0], [0], [1], [0, 0, 1, 1], [], []>} : vector<8x64xf32>, vector<64x64xf32>, vector<8x64xf32> -> vector<8x64xf32>
    %42 = arith.addf %38, %41 : vector<8x64xf32>
    %c0_28 = arith.constant 0 : index
    %c0_29 = arith.constant 0 : index
    %43 = vector.load %arg7[%c0_28, %c0_29] : memref<1x64xf32, #tpu.memory_space<vmem>>, vector<1x64xf32>
    %44 = vector.broadcast %43 : vector<1x64xf32> to vector<8x64xf32>
    %45 = arith.addf %42, %44 : vector<8x64xf32>
    %46 = vector.extract_strided_slice %45 {offsets = [0, 0], sizes = [2, 64], strides = [1, 1]} : vector<8x64xf32> to vector<2x64xf32>
    %47 = vector.extract_strided_slice %45 {offsets = [2, 0], sizes = [2, 64], strides = [1, 1]} : vector<8x64xf32> to vector<2x64xf32>
    %48 = arith.maximumf %46, %47 : vector<2x64xf32>
    %49 = vector.extract_strided_slice %45 {offsets = [4, 0], sizes = [2, 64], strides = [1, 1]} : vector<8x64xf32> to vector<2x64xf32>
    %50 = arith.maximumf %48, %49 : vector<2x64xf32>
    %51 = vector.extract_strided_slice %45 {offsets = [6, 0], sizes = [2, 64], strides = [1, 1]} : vector<8x64xf32> to vector<2x64xf32>
    %52 = arith.maximumf %50, %51 : vector<2x64xf32>
    %c0_30 = arith.constant 0 : index
    %c0_31 = arith.constant 0 : index
    %53 = vector.load %arg8[%c0_30, %c0_31] : memref<64x512xf32, #tpu.memory_space<vmem>>, vector<64x512xf32>
    %cst_32 = arith.constant dense<0.000000e+00> : vector<2x512xf32>
    %54 = tpu.matmul %52, %53, %cst_32 {dimension_numbers = #tpu.dot_dimension_numbers<[1], [0], [0], [1], [0, 0, 1, 1], [], []>} : vector<2x64xf32>, vector<64x512xf32>, vector<2x512xf32> -> vector<2x512xf32>
    %c0_33 = arith.constant 0 : index
    %c0_34 = arith.constant 0 : index
    %55 = vector.load %arg9[%c0_33, %c0_34] : memref<1x512xf32, #tpu.memory_space<vmem>>, vector<1x512xf32>
    %56 = vector.broadcast %55 : vector<1x512xf32> to vector<2x512xf32>
    %57 = arith.addf %54, %56 : vector<2x512xf32>
    %cst_35 = arith.constant 0.000000e+00 : f32
    %58 = vector.broadcast %cst_35 : f32 to vector<2x512xf32>
    %59 = arith.maximumf %57, %58 : vector<2x512xf32>
    %c0_36 = arith.constant 0 : index
    %c0_37 = arith.constant 0 : index
    %60 = vector.load %arg10[%c0_36, %c0_37] : memref<512x256xf32, #tpu.memory_space<vmem>>, vector<512x256xf32>
    %cst_38 = arith.constant dense<0.000000e+00> : vector<2x256xf32>
    %61 = tpu.matmul %59, %60, %cst_38 {dimension_numbers = #tpu.dot_dimension_numbers<[1], [0], [0], [1], [0, 0, 1, 1], [], []>} : vector<2x512xf32>, vector<512x256xf32>, vector<2x256xf32> -> vector<2x256xf32>
    %c0_39 = arith.constant 0 : index
    %c0_40 = arith.constant 0 : index
    %62 = vector.load %arg11[%c0_39, %c0_40] : memref<1x256xf32, #tpu.memory_space<vmem>>, vector<1x256xf32>
    %63 = vector.broadcast %62 : vector<1x256xf32> to vector<2x256xf32>
    %64 = arith.addf %61, %63 : vector<2x256xf32>
    %cst_41 = arith.constant 0.000000e+00 : f32
    %65 = vector.broadcast %cst_41 : f32 to vector<2x256xf32>
    %66 = arith.maximumf %64, %65 : vector<2x256xf32>
    %c0_42 = arith.constant 0 : index
    %c0_43 = arith.constant 0 : index
    %67 = vector.load %arg12[%c0_42, %c0_43] : memref<256x128xf32, #tpu.memory_space<vmem>>, vector<256x128xf32>
    %cst_44 = arith.constant dense<0.000000e+00> : vector<2x128xf32>
    %68 = tpu.matmul %66, %67, %cst_44 {dimension_numbers = #tpu.dot_dimension_numbers<[1], [0], [0], [1], [0, 0, 1, 1], [], []>} : vector<2x256xf32>, vector<256x128xf32>, vector<2x128xf32> -> vector<2x128xf32>
    %c0_45 = arith.constant 0 : index
    %c0_46 = arith.constant 0 : index
    %69 = vector.load %arg13[%c0_45, %c0_46] : memref<1x128xf32, #tpu.memory_space<vmem>>, vector<1x128xf32>
    %70 = vector.broadcast %69 : vector<1x128xf32> to vector<2x128xf32>
    %71 = arith.addf %68, %70 : vector<2x128xf32>
    %c0_47 = arith.constant 0 : index
    %c0_48 = arith.constant 0 : index
    %72 = vector.load %arg14[%c0_47, %c0_48] : memref<2x128xf32, #tpu.memory_space<vmem>>, vector<2x128xf32>
    tpu.vector_store %arg14[%c0_47, %c0_48], %71 {strides = array<i32>} : memref<2x128xf32, #tpu.memory_space<vmem>>, vector<2x128xf32>,
    return
  }
  func.func @transform_0(%arg0: i32) -> (i32, i32) {
    %c0_i32 = arith.constant 0 : i32
    %c0_i32_0 = arith.constant 0 : i32
    %c0_i32_1 = arith.constant 0 : i32
    return %c0_i32, %c0_i32_0 : i32, i32
  }
  func.func @transform_1(%arg0: i32) -> (i32, i32) {
    %c0_i32 = arith.constant 0 : i32
    %c0_i32_0 = arith.constant 0 : i32
    %c0_i32_1 = arith.constant 0 : i32
    return %c0_i32, %c0_i32_0 : i32, i32
  }
  func.func @transform_2(%arg0: i32) -> (i32, i32) {
    %c0_i32 = arith.constant 0 : i32
    %c0_i32_0 = arith.constant 0 : i32
    %c0_i32_1 = arith.constant 0 : i32
    return %c0_i32, %c0_i32_0 : i32, i32
  }
  func.func @transform_3(%arg0: i32) -> (i32, i32) {
    %c0_i32 = arith.constant 0 : i32
    %c0_i32_0 = arith.constant 0 : i32
    %c0_i32_1 = arith.constant 0 : i32
    return %c0_i32, %c0_i32_0 : i32, i32
  }
  func.func @transform_4(%arg0: i32) -> (i32, i32) {
    %c0_i32 = arith.constant 0 : i32
    %c0_i32_0 = arith.constant 0 : i32
    %c0_i32_1 = arith.constant 0 : i32
    return %c0_i32, %c0_i32_0 : i32, i32
  }
  func.func @transform_5(%arg0: i32) -> (i32, i32) {
    %c0_i32 = arith.constant 0 : i32
    %c0_i32_0 = arith.constant 0 : i32
    %c0_i32_1 = arith.constant 0 : i32
    return %c0_i32, %c0_i32_0 : i32, i32
  }
  func.func @transform_6(%arg0: i32) -> (i32, i32) {
    %c0_i32 = arith.constant 0 : i32
    %c0_i32_0 = arith.constant 0 : i32
    %c0_i32_1 = arith.constant 0 : i32
    return %c0_i32, %c0_i32_0 : i32, i32
  }
  func.func @transform_7(%arg0: i32) -> (i32, i32) {
    %c0_i32 = arith.constant 0 : i32
    %c0_i32_0 = arith.constant 0 : i32
    %c0_i32_1 = arith.constant 0 : i32
    return %c0_i32, %c0_i32_0 : i32, i32
  }
  func.func @transform_8(%arg0: i32) -> (i32, i32) {
    %c0_i32 = arith.constant 0 : i32
    %c0_i32_0 = arith.constant 0 : i32
    %c0_i32_1 = arith.constant 0 : i32
    return %c0_i32, %c0_i32_0 : i32, i32
  }
  func.func @transform_9(%arg0: i32) -> (i32, i32) {
    %c0_i32 = arith.constant 0 : i32
    %c0_i32_0 = arith.constant 0 : i32
    %c0_i32_1 = arith.constant 0 : i32
    return %c0_i32, %c0_i32_0 : i32, i32
  }
  func.func @transform_10(%arg0: i32) -> (i32, i32) {
    %c0_i32 = arith.constant 0 : i32
    %c0_i32_0 = arith.constant 0 : i32
    %c0_i32_1 = arith.constant 0 : i32
    return %c0_i32, %c0_i32_0 : i32, i32
  }
  func.func @transform_11(%arg0: i32) -> (i32, i32) {
    %c0_i32 = arith.constant 0 : i32
    %c0_i32_0 = arith.constant 0 : i32
    %c0_i32_1 = arith.constant 0 : i32
    return %c0_i32, %c0_i32_0 : i32, i32
  }
  func.func @transform_12(%arg0: i32) -> (i32, i32) {
    %c0_i32 = arith.constant 0 : i32
    %c0_i32_0 = arith.constant 0 : i32
    %c0_i32_1 = arith.constant 0 : i32
    return %c0_i32, %c0_i32_0 : i32, i32
  }
  func.func @transform_13(%arg0: i32) -> (i32, i32) {
    %c0_i32 = arith.constant 0 : i32
    %c0_i32_0 = arith.constant 0 : i32
    %c0_i32_1 = arith.constant 0 : i32
    return %c0_i32, %c0_i32_0 : i32, i32
  }
}

</mosaic_0001>

<llo_original>
// kernel: ddqn_forward.1
$region0: #{ddqn_forward.1}
  #allocation0 [shape = 'u32[]', space=smem, size = 0x4, offset = 0x4, fixed_abs, tag = 'smem constant byte address 0x4 - core index']
  #allocation1 [shape = 'u32[144,128]{1,0:T(1,128)}', space=vmem, size = 0x12000, scoped, tag = 'internal scratch']
  %s0 = inlined_call_operand.vmem [shape: f32[128,64], index: 0, kind: input, shape index: {}]
  %s1 = inlined_call_operand.vmem [shape: f32[64,32], index: 1, kind: input, shape index: {}]
  %s2 = inlined_call_operand.vmem [shape: f32[1,32], index: 2, kind: input, shape index: {}]
  %s3 = inlined_call_operand.vmem [shape: f32[128,64], index: 3, kind: input, shape index: {}]
  %s4 = inlined_call_operand.vmem [shape: f32[1,64], index: 4, kind: input, shape index: {}]
  %s5 = inlined_call_operand.vmem [shape: f32[256,64], index: 5, kind: input, shape index: {}]
  %s6 = inlined_call_operand.vmem [shape: f32[1,64], index: 6, kind: input, shape index: {}]
  %s7 = inlined_call_operand.vmem [shape: f32[64,512], index: 7, kind: input, shape index: {}]
  %s8 = inlined_call_operand.vmem [shape: f32[1,512], index: 8, kind: input, shape index: {}]
  %s9 = inlined_call_operand.vmem [shape: f32[512,256], index: 9, kind: input, shape index: {}]
  %s10 = inlined_call_operand.vmem [shape: f32[1,256], index: 10, kind: input, shape index: {}]
  %s11 = inlined_call_operand.vmem [shape: f32[256,128], index: 11, kind: input, shape index: {}]
  %s12 = inlined_call_operand.vmem [shape: f32[1,128], index: 12, kind: input, shape index: {}]
  %s13 = inlined_call_operand.vmem [shape: f32[2,128], index: 13, kind: output, shape index: {}]
  %s14 = sld [smem:[#allocation0]]
  $region62: #{ddqn_forward.1} parent=0
    _
  %s16 = ssub.s32 1, %s14
  %s17 = scalar_select 0, %s16, %s14
  // Predicated region
  $region2: #{ddqn_forward.1} parent=0 // pred_check
    _
  $region3: #{ddqn_forward.1} parent=0 // pred_check_branch
    %19 = sbr.rel (0) target = $region5
  $region4: #{ddqn_forward.1} parent=0 // pred_region
    _
  $region5: #{ddqn_forward.1} parent=0 // pred_fallthru
    _
  // Predicated region
  $region6: #{ddqn_forward.1} parent=0 // pred_check
    _
  $region7: #{ddqn_forward.1} parent=0 // pred_check_branch
    %21 = sbr.rel (0) target = $region9
  $region8: #{ddqn_forward.1} parent=0 // pred_region
    _
  $region9: #{ddqn_forward.1} parent=0 // pred_fallthru
    _
  // Predicated region
  $region10: #{ddqn_forward.1} parent=0 // pred_check
    _
  $region11: #{ddqn_forward.1} parent=0 // pred_check_branch
    %23 = sbr.rel (0) target = $region13
  $region12: #{ddqn_forward.1} parent=0 // pred_region
    _
  $region13: #{ddqn_forward.1} parent=0 // pred_fallthru
    _
  // Predicated region
  $region14: #{ddqn_forward.1} parent=0 // pred_check
    _
  $region15: #{ddqn_forward.1} parent=0 // pred_check_branch
    %25 = sbr.rel (0) target = $region17
  $region16: #{ddqn_forward.1} parent=0 // pred_region
    _
  $region17: #{ddqn_forward.1} parent=0 // pred_fallthru
    _
  // Predicated region
  $region18: #{ddqn_forward.1} parent=0 // pred_check
    _
  $region19: #{ddqn_forward.1} parent=0 // pred_check_branch
    %27 = sbr.rel (0) target = $region21
  $region20: #{ddqn_forward.1} parent=0 // pred_region
    _
  $region21: #{ddqn_forward.1} parent=0 // pred_fallthru
    _
  // Predicated region
  $region22: #{ddqn_forward.1} parent=0 // pred_check
    _
  $region23: #{ddqn_forward.1} parent=0 // pred_check_branch
    %29 = sbr.rel (0) target = $region25
  $region24: #{ddqn_forward.1} parent=0 // pred_region
    _
  $region25: #{ddqn_forward.1} parent=0 // pred_fallthru
    _
  // Predicated region
  $region26: #{ddqn_forward.1} parent=0 // pred_check
    _
  $region27: #{ddqn_forward.1} parent=0 // pred_check_branch
    %31 = sbr.rel (0) target = $region29
  $region28: #{ddqn_forward.1} parent=0 // pred_region
    _
  $region29: #{ddqn_forward.1} parent=0 // pred_fallthru
    _
  // Predicated region
  $region30: #{ddqn_forward.1} parent=0 // pred_check
    _
  $region31: #{ddqn_forward.1} parent=0 // pred_check_branch
    %33 = sbr.rel (0) target = $region33
  $region32: #{ddqn_forward.1} parent=0 // pred_region
    _
  $region33: #{ddqn_forward.1} parent=0 // pred_fallthru
    _
  // Predicated region
  $region34: #{ddqn_forward.1} parent=0 // pred_check
    _
  $region35: #{ddqn_forward.1} parent=0 // pred_check_branch
    %35 = sbr.rel (0) target = $region37
  $region36: #{ddqn_forward.1} parent=0 // pred_region
    _
  $region37: #{ddqn_forward.1} parent=0 // pred_fallthru
    _
  // Predicated region
  $region38: #{ddqn_forward.1} parent=0 // pred_check
    _
  $region39: #{ddqn_forward.1} parent=0 // pred_check_branch
    %37 = sbr.rel (0) target = $region41
  $region40: #{ddqn_forward.1} parent=0 // pred_region
    _
  $region41: #{ddqn_forward.1} parent=0 // pred_fallthru
    _
  // Predicated region
  $region42: #{ddqn_forward.1} parent=0 // pred_check
    _
  $region43: #{ddqn_forward.1} parent=0 // pred_check_branch
    %39 = sbr.rel (0) target = $region45
  $region44: #{ddqn_forward.1} parent=0 // pred_region
    _
  $region45: #{ddqn_forward.1} parent=0 // pred_fallthru
    _
  // Predicated region
  $region46: #{ddqn_forward.1} parent=0 // pred_check
    _
  $region47: #{ddqn_forward.1} parent=0 // pred_check_branch
    %41 = sbr.rel (0) target = $region49
  $region48: #{ddqn_forward.1} parent=0 // pred_region
    _
  $region49: #{ddqn_forward.1} parent=0 // pred_fallthru
    _
  // Predicated region
  $region50: #{ddqn_forward.1} parent=0 // pred_check
    _
  $region51: #{ddqn_forward.1} parent=0 // pred_check_branch
    %43 = sbr.rel (0) target = $region53
  $region52: #{ddqn_forward.1} parent=0 // pred_region
    _
  $region53: #{ddqn_forward.1} parent=0 // pred_fallthru
    _
  %v44 = vld [vmem:[%s0] sm:$0xff]
  %v45 = vld [vmem:[%s0 + $0x8] sm:$0xff]
  %v46 = vld [vmem:[%s0 + $0x10] sm:$0xff]
  %v47 = vld [vmem:[%s0 + $0x18] sm:$0xff]
  %v48 = vld [vmem:[%s0 + $0x20] sm:$0xff]
  %v49 = vld [vmem:[%s0 + $0x28] sm:$0xff]
  %v50 = vld [vmem:[%s0 + $0x30] sm:$0xff]
  %v51 = vld [vmem:[%s0 + $0x38] sm:$0xff]
  %v52 = vld [vmem:[%s0 + $0x40] sm:$0xff]
  %v53 = vld [vmem:[%s0 + $0x48] sm:$0xff]
  %v54 = vld [vmem:[%s0 + $0x50] sm:$0xff]
  %v55 = vld [vmem:[%s0 + $0x58] sm:$0xff]
  %v56 = vld [vmem:[%s0 + $0x60] sm:$0xff]
  %v57 = vld [vmem:[%s0 + $0x68] sm:$0xff]
  %v58 = vld [vmem:[%s0 + $0x70] sm:$0xff]
  %v59 = vld [vmem:[%s0 + $0x78] sm:$0xff]
  %v60 = vld [vmem:[%s1] sm:$0xff]
  %v61 = vld [vmem:[%s1 + $0x8] sm:$0xff]
  %v62 = vld [vmem:[%s1 + $0x10] sm:$0xff]
  %v63 = vld [vmem:[%s1 + $0x18] sm:$0xff]
  %v64 = vld [vmem:[%s1 + $0x20] sm:$0xff]
  %v65 = vld [vmem:[%s1 + $0x28] sm:$0xff]
  %v66 = vld [vmem:[%s1 + $0x30] sm:$0xff]
  %v67 = vld [vmem:[%s1 + $0x38] sm:$0xff]
  %v68 = vld [vmem:[%s2] sm:$0x1]
  %v70 = vlaneseq
  %v71 = vshrl.u32 %v70, 7
  %v72 = vsub.s32 0, %v71
  %v73 = vrot.slane %v68, %v72
  %vm75 = vcmask 523264
  %v77 = vsel %vm75, %v44, 0
  %v80 = vsel %vm75, %v45, 0
  %v83 = vsel %vm75, %v46, 0
  %v86 = vsel %vm75, %v47, 0
  %v89 = vsel %vm75, %v48, 0
  %v92 = vsel %vm75, %v49, 0
  %v95 = vsel %vm75, %v50, 0
  %v98 = vsel %vm75, %v51, 0
  %v101 = vsel %vm75, %v52, 0
  %v104 = vsel %vm75, %v53, 0
  %v107 = vsel %vm75, %v54, 0
  %v110 = vsel %vm75, %v55, 0
  %v113 = vsel %vm75, %v56, 0
  %v116 = vsel %vm75, %v57, 0
  %v119 = vsel %vm75, %v58, 0
  %v122 = vsel %vm75, %v59, 0
  %124 = vmatprep.subr.mxu0 0.0
  %125 = vmatpush1.msra.mxu0 %v60
  %126 = vmatprep.subr.mxu0 0.0
  %127 = vmatpush1.msra.mxu0 %v61
  %128 = vmatprep.subr.mxu0 0.0
  %129 = vmatpush1.msra.mxu0 %v62
  %130 = vmatprep.subr.mxu0 0.0
  %131 = vmatpush1.msra.mxu0 %v63
  %132 = vmatprep.subr.mxu0 0.0
  %133 = vmatpush1.msra.mxu0 %v64
  %134 = vmatprep.subr.mxu0 0.0
  %135 = vmatpush1.msra.mxu0 %v65
  %136 = vmatprep.subr.mxu0 0.0
  %137 = vmatpush1.msra.mxu0 %v66
  %138 = vmatprep.subr.mxu0 0.0
  %139 = vmatpush1.msra.mxu0 %v67
  %140 = vmatprep.subr.mxu0 0.0
  %141 = vmatpush1.msra.mxu0 0.0
  %142 = vmatprep.subr.mxu0 0.0
  %143 = vmatpush1.msra.mxu0 0.0
  %144 = vmatprep.subr.mxu0 0.0
  %145 = vmatpush1.msra.mxu0 0.0
  %146 = vmatprep.subr.mxu0 0.0
  %147 = vmatpush1.msra.mxu0 0.0
  %148 = vmatprep.subr.mxu0 0.0
  %149 = vmatpush1.msra.mxu0 0.0
  %150 = vmatprep.subr.mxu0 0.0
  %151 = vmatpush1.msra.mxu0 0.0
  %152 = vmatprep.subr.mxu0 0.0
  %153 = vmatpush1.msra.mxu0 0.0
  %154 = vmatprep.subr.mxu0 0.0
  %155 = vmatpush1.msra.mxu0 0.0
  %156 = vmatprep.subr.mxu0 0.0
  %157 = vmatpush1.msra.mxu0 0.0
  %158 = vmatprep.subr.mxu0 0.0
  %159 = vmatpush1.msra.mxu0 0.0
  %160 = vmatprep.subr.mxu0 0.0
  %161 = vmatpush1.msra.mxu0 0.0
  %162 = vmatprep.subr.mxu0 0.0
  %163 = vmatpush1.msra.mxu0 0.0
  %164 = vmatprep.subr.mxu0 0.0
  %165 = vmatpush1.msra.mxu0 0.0
  %166 = vmatprep.subr.mxu0 0.0
  %167 = vmatpush1.msra.mxu0 0.0
  %168 = vmatprep.subr.mxu0 0.0
  %169 = vmatpush1.msra.mxu0 0.0
  %170 = vmatprep.subr.mxu0 0.0
  %171 = vmatpush1.msra.mxu0 0.0
  %172 = vmatprep.subr.mxu0 0.0
  %173 = vmatpush1.msra.mxu0 0.0
  %174 = vmatprep.subr.mxu0 0.0
  %175 = vmatpush1.msra.mxu0 0.0
  %176 = vmatprep.subr.mxu0 0.0
  %177 = vmatpush1.msra.mxu0 0.0
  %178 = vmatprep.subr.mxu0 0.0
  %179 = vmatpush1.msra.mxu0 0.0
  %180 = vmatprep.subr.mxu0 0.0
  %181 = vmatpush1.msra.mxu0 0.0
  %182 = vmatprep.subr.mxu0 0.0
  %183 = vmatpush1.msra.mxu0 0.0
  %184 = vmatprep.subr.mxu0 0.0
  %185 = vmatpush1.msra.mxu0 0.0
  %186 = vmatprep.subr.mxu0 0.0
  %187 = vmatpush1.msra.mxu0 0.0
  %188 = vmatprep.mubr.f32.mxu0 0.0
  %189 = vmatmul.mubr.f32.gmra.mrb[0].mxu0 %v77
  %v190 = vpop.f32.mrb[0].mxu0
  %v191 = vadd.f32 %v73, %v190
  %v192 = vpop.f32.mrb[0].mxu0
  %193 = vmatprep.mubr.f32.mxu0 0.0
  %194 = vmatmul.mubr.f32.gmra.mrb[0].mxu0 %v80
  %v195 = vpop.f32.mrb[0].mxu0
  %v196 = vadd.f32 %v73, %v195
  %v197 = vpop.f32.mrb[0].mxu0
  %198 = vmatprep.mubr.f32.mxu0 0.0
  %199 = vmatmul.mubr.f32.gmra.mrb[0].mxu0 %v83
  %v200 = vpop.f32.mrb[0].mxu0
  %v201 = vadd.f32 %v73, %v200
  %v202 = vpop.f32.mrb[0].mxu0
  %203 = vmatprep.mubr.f32.mxu0 0.0
  %204 = vmatmul.mubr.f32.gmra.mrb[0].mxu0 %v86
  %v205 = vpop.f32.mrb[0].mxu0
  %v206 = vadd.f32 %v73, %v205
  %v207 = vpop.f32.mrb[0].mxu0
  %208 = vmatprep.mubr.f32.mxu0 0.0
  %209 = vmatmul.mubr.f32.gmra.mrb[0].mxu0 %v89
  %v210 = vpop.f32.mrb[0].mxu0
  %v211 = vadd.f32 %v73, %v210
  %v212 = vpop.f32.mrb[0].mxu0
  %213 = vmatprep.mubr.f32.mxu0 0.0
  %214 = vmatmul.mubr.f32.gmra.mrb[0].mxu0 %v92
  %v215 = vpop.f32.mrb[0].mxu0
  %v216 = vadd.f32 %v73, %v215
  %v217 = vpop.f32.mrb[0].mxu0
  %218 = vmatprep.mubr.f32.mxu0 0.0
  %219 = vmatmul.mubr.f32.gmra.mrb[0].mxu0 %v95
  %v220 = vpop.f32.mrb[0].mxu0
  %v221 = vadd.f32 %v73, %v220
  %v222 = vpop.f32.mrb[0].mxu0
  %223 = vmatprep.mubr.f32.mxu0 0.0
  %224 = vmatmul.mubr.f32.gmra.mrb[0].mxu0 %v98
  %v225 = vpop.f32.mrb[0].mxu0
  %v226 = vadd.f32 %v73, %v225
  %v227 = vpop.f32.mrb[0].mxu0
  %228 = vmatprep.mubr.f32.mxu0 0.0
  %229 = vmatmul.mubr.f32.gmra.mrb[0].mxu0 %v101
  %v230 = vpop.f32.mrb[0].mxu0
  %v231 = vadd.f32 %v73, %v230
  %v232 = vpop.f32.mrb[0].mxu0
  %233 = vmatprep.mubr.f32.mxu0 0.0
  %234 = vmatmul.mubr.f32.gmra.mrb[0].mxu0 %v104
  %v235 = vpop.f32.mrb[0].mxu0
  %v236 = vadd.f32 %v73, %v235
  %v237 = vpop.f32.mrb[0].mxu0
  %238 = vmatprep.mubr.f32.mxu0 0.0
  %239 = vmatmul.mubr.f32.gmra.mrb[0].mxu0 %v107
  %v240 = vpop.f32.mrb[0].mxu0
  %v241 = vadd.f32 %v73, %v240
  %v242 = vpop.f32.mrb[0].mxu0
  %243 = vmatprep.mubr.f32.mxu0 0.0
  %244 = vmatmul.mubr.f32.gmra.mrb[0].mxu0 %v110
  %v245 = vpop.f32.mrb[0].mxu0
  %v246 = vadd.f32 %v73, %v245
  %v247 = vpop.f32.mrb[0].mxu0
  %248 = vmatprep.mubr.f32.mxu0 0.0
  %249 = vmatmul.mubr.f32.gmra.mrb[0].mxu0 %v113
  %v250 = vpop.f32.mrb[0].mxu0
  %v251 = vadd.f32 %v73, %v250
  %v252 = vpop.f32.mrb[0].mxu0
  %253 = vmatprep.mubr.f32.mxu0 0.0
  %254 = vmatmul.mubr.f32.gmra.mrb[0].mxu0 %v116
  %v255 = vpop.f32.mrb[0].mxu0
  %v256 = vadd.f32 %v73, %v255
  %v257 = vpop.f32.mrb[0].mxu0
  %258 = vmatprep.mubr.f32.mxu0 0.0
  %259 = vmatmul.mubr.f32.gmra.mrb[0].mxu0 %v119
  %v260 = vpop.f32.mrb[0].mxu0
  %v261 = vadd.f32 %v73, %v260
  %v262 = vpop.f32.mrb[0].mxu0
  %263 = vmatprep.mubr.f32.mxu0 0.0
  %264 = vmatmul.mubr.f32.gmra.mrb[0].mxu0 %v122
  %v265 = vpop.f32.mrb[0].mxu0
  %v266 = vadd.f32 %v73, %v265
  %v267 = vpop.f32.mrb[0].mxu0
  %268 = vdwg.mxu0
  %v269 = vmax.f32 %v191, 0.0
  %v270 = vmax.f32 %v196, 0.0
  %v271 = vmax.f32 %v201, 0.0
  %v272 = vmax.f32 %v206, 0.0
  %v273 = vmax.f32 %v211, 0.0
  %v274 = vmax.f32 %v216, 0.0
  %v275 = vmax.f32 %v221, 0.0
  %v276 = vmax.f32 %v226, 0.0
  %v277 = vmax.f32 %v231, 0.0
  %v278 = vmax.f32 %v236, 0.0
  %v279 = vmax.f32 %v241, 0.0
  %v280 = vmax.f32 %v246, 0.0
  %v281 = vmax.f32 %v251, 0.0
  %v282 = vmax.f32 %v256, 0.0
  %v283 = vmax.f32 %v261, 0.0
  %v284 = vmax.f32 %v266, 0.0
  %v285 = vld [vmem:[%s3] sm:$0xff]
  %v286 = vld [vmem:[%s3 + $0x8] sm:$0xff]
  %v287 = vld [vmem:[%s3 + $0x10] sm:$0xff]
  %v288 = vld [vmem:[%s3 + $0x18] sm:$0xff]
  %v289 = vld [vmem:[%s3 + $0x20] sm:$0xff]
  %v290 = vld [vmem:[%s3 + $0x28] sm:$0xff]
  %v291 = vld [vmem:[%s3 + $0x30] sm:$0xff]
  %v292 = vld [vmem:[%s3 + $0x38] sm:$0xff]
  %vm293 = vcmask 261120
  %v295 = vsel %vm293, %v273, 0
  %v298 = vsel %vm293, %v274, 0
  %v301 = vsel %vm293, %v275, 0
  %v304 = vsel %vm293, %v276, 0
  %306 = vmatprep.subr.mxu0 0.0
  %307 = vmatpush1.msra.mxu0 %v289
  %308 = vmatprep.subr.mxu0 0.0
  %309 = vmatpush1.msra.mxu0 %v290
  %310 = vmatprep.subr.mxu0 0.0
  %311 = vmatpush1.msra.mxu0 %v291
  %312 = vmatprep.subr.mxu0 0.0
  %313 = vmatpush1.msra.mxu0 %v292
  %314 = vmatprep.subr.mxu0 0.0
  %315 = vmatpush1.msra.mxu0 0.0
  %316 = vmatprep.subr.mxu0 0.0
  %317 = vmatpush1.msra.mxu0 0.0
  %318 = vmatprep.subr.mxu0 0.0
  %319 = vmatpush1.msra.mxu0 0.0
  %320 = vmatprep.subr.mxu0 0.0
  %321 = vmatpush1.msra.mxu0 0.0
  %322 = vmatprep.subr.mxu0 0.0
  %323 = vmatpush1.msra.mxu0 0.0
  %324 = vmatprep.subr.mxu0 0.0
  %325 = vmatpush1.msra.mxu0 0.0
  %326 = vmatprep.subr.mxu0 0.0
  %327 = vmatpush1.msra.mxu0 0.0
  %328 = vmatprep.subr.mxu0 0.0
  %329 = vmatpush1.msra.mxu0 0.0
  %330 = vmatprep.subr.mxu0 0.0
  %331 = vmatpush1.msra.mxu0 0.0
  %332 = vmatprep.subr.mxu0 0.0
  %333 = vmatpush1.msra.mxu0 0.0
  %334 = vmatprep.subr.mxu0 0.0
  %335 = vmatpush1.msra.mxu0 0.0
  %336 = vmatprep.subr.mxu0 0.0
  %337 = vmatpush1.msra.mxu0 0.0
  %338 = vmatprep.subr.mxu0 0.0
  %339 = vmatpush1.msra.mxu0 0.0
  %340 = vmatprep.subr.mxu0 0.0
  %341 = vmatpush1.msra.mxu0 0.0
  %342 = vmatprep.subr.mxu0 0.0
  %343 = vmatpush1.msra.mxu0 0.0
  %344 = vmatprep.subr.mxu0 0.0
  %345 = vmatpush1.msra.mxu0 0.0
  %346 = vmatprep.subr.mxu0 0.0
  %347 = vmatpush1.msra.mxu0 0.0
  %348 = vmatprep.subr.mxu0 0.0
  %349 = vmatpush1.msra.mxu0 0.0
  %350 = vmatprep.subr.mxu0 0.0
  %351 = vmatpush1.msra.mxu0 0.0
  %352 = vmatprep.subr.mxu0 0.0
  %353 = vmatpush1.msra.mxu0 0.0
  %354 = vmatprep.subr.mxu0 0.0
  %355 = vmatpush1.msra.mxu0 0.0
  %356 = vmatprep.subr.mxu0 0.0
  %357 = vmatpush1.msra.mxu0 0.0
  %358 = vmatprep.subr.mxu0 0.0
  %359 = vmatpush1.msra.mxu0 0.0
  %360 = vmatprep.subr.mxu0 0.0
  %361 = vmatpush1.msra.mxu0 0.0
  %362 = vmatprep.subr.mxu0 0.0
  %363 = vmatpush1.msra.mxu0 0.0
  %364 = vmatprep.subr.mxu0 0.0
  %365 = vmatpush1.msra.mxu0 0.0
  %366 = vmatprep.subr.mxu0 0.0
  %367 = vmatpush1.msra.mxu0 0.0
  %368 = vmatprep.subr.mxu0 0.0
  %369 = vmatpush1.msra.mxu0 0.0
  %370 = vmatprep.mubr.f32.mxu0 0.0
  %371 = vmatmul.mubr.f32.gmra.mrb[0].mxu0 %v295
  %v372 = vpop.f32.mrb[0].mxu0
  %v373 = vadd.f32 0.0, %v372
  %v374 = vpop.f32.mrb[0].mxu0
  %375 = vmatprep.mubr.f32.mxu0 0.0
  %376 = vmatmul.mubr.f32.gmra.mrb[0].mxu0 %v298
  %v377 = vpop.f32.mrb[0].mxu0
  %v378 = vadd.f32 0.0, %v377
  %v379 = vpop.f32.mrb[0].mxu0
  %380 = vmatprep.mubr.f32.mxu0 0.0
  %381 = vmatmul.mubr.f32.gmra.mrb[0].mxu0 %v301
  %v382 = vpop.f32.mrb[0].mxu0
  %v383 = vadd.f32 0.0, %v382
  %v384 = vpop.f32.mrb[0].mxu0
  %385 = vmatprep.mubr.f32.mxu0 0.0
  %386 = vmatmul.mubr.f32.gmra.mrb[0].mxu0 %v304
  %v387 = vpop.f32.mrb[0].mxu0
  %v388 = vadd.f32 0.0, %v387
  %v389 = vpop.f32.mrb[0].mxu0
  %390 = vdwg.mxu0
  %v392 = vsel %vm293, %v269, 0
  %v395 = vsel %vm293, %v270, 0
  %v398 = vsel %vm293, %v271, 0
  %v401 = vsel %vm293, %v272, 0
  %403 = vmatprep.subr.mxu0 0.0
  %404 = vmatpush1.msra.mxu0 %v285
  %405 = vmatprep.subr.mxu0 0.0
  %406 = vmatpush1.msra.mxu0 %v286
  %407 = vmatprep.subr.mxu0 0.0
  %408 = vmatpush1.msra.mxu0 %v287
  %409 = vmatprep.subr.mxu0 0.0
  %410 = vmatpush1.msra.mxu0 %v288
  %411 = vmatprep.subr.mxu0 0.0
  %412 = vmatpush1.msra.mxu0 0.0
  %413 = vmatprep.subr.mxu0 0.0
  %414 = vmatpush1.msra.mxu0 0.0
  %415 = vmatprep.subr.mxu0 0.0
  %416 = vmatpush1.msra.mxu0 0.0
  %417 = vmatprep.subr.mxu0 0.0
  %418 = vmatpush1.msra.mxu0 0.0
  %419 = vmatprep.subr.mxu0 0.0
  %420 = vmatpush1.msra.mxu0 0.0
  %421 = vmatprep.subr.mxu0 0.0
  %422 = vmatpush1.msra.mxu0 0.0
  %423 = vmatprep.subr.mxu0 0.0
  %424 = vmatpush1.msra.mxu0 0.0
  %425 = vmatprep.subr.mxu0 0.0
  %426 = vmatpush1.msra.mxu0 0.0
  %427 = vmatprep.subr.mxu0 0.0
  %428 = vmatpush1.msra.mxu0 0.0
  %429 = vmatprep.subr.mxu0 0.0
  %430 = vmatpush1.msra.mxu0 0.0
  %431 = vmatprep.subr.mxu0 0.0
  %432 = vmatpush1.msra.mxu0 0.0
  %433 = vmatprep.subr.mxu0 0.0
  %434 = vmatpush1.msra.mxu0 0.0
  %435 = vmatprep.subr.mxu0 0.0
  %436 = vmatpush1.msra.mxu0 0.0
  %437 = vmatprep.subr.mxu0 0.0
  %438 = vmatpush1.msra.mxu0 0.0
  %439 = vmatprep.subr.mxu0 0.0
  %440 = vmatpush1.msra.mxu0 0.0
  %441 = vmatprep.subr.mxu0 0.0
  %442 = vmatpush1.msra.mxu0 0.0
  %443 = vmatprep.subr.mxu0 0.0
  %444 = vmatpush1.msra.mxu0 0.0
  %445 = vmatprep.subr.mxu0 0.0
  %446 = vmatpush1.msra.mxu0 0.0
  %447 = vmatprep.subr.mxu0 0.0
  %448 = vmatpush1.msra.mxu0 0.0
  %449 = vmatprep.subr.mxu0 0.0
  %450 = vmatpush1.msra.mxu0 0.0
  %451 = vmatprep.subr.mxu0 0.0
  %452 = vmatpush1.msra.mxu0 0.0
  %453 = vmatprep.subr.mxu0 0.0
  %454 = vmatpush1.msra.mxu0 0.0
  %455 = vmatprep.subr.mxu0 0.0
  %456 = vmatpush1.msra.mxu0 0.0
  %457 = vmatprep.subr.mxu0 0.0
  %458 = vmatpush1.msra.mxu0 0.0
  %459 = vmatprep.subr.mxu0 0.0
  %460 = vmatpush1.msra.mxu0 0.0
  %461 = vmatprep.subr.mxu0 0.0
  %462 = vmatpush1.msra.mxu0 0.0
  %463 = vmatprep.subr.mxu0 0.0
  %464 = vmatpush1.msra.mxu0 0.0
  %465 = vmatprep.subr.mxu0 0.0
  %466 = vmatpush1.msra.mxu0 0.0
  %467 = vmatprep.mubr.f32.mxu0 0.0
  %468 = vmatmul.mubr.f32.gmra.mrb[0].mxu0 %v392
  %v469 = vpop.f32.mrb[0].mxu0
  %v470 = vadd.f32 %v373, %v469
  %v471 = vpop.f32.mrb[0].mxu0
  %472 = vmatprep.mubr.f32.mxu0 0.0
  %473 = vmatmul.mubr.f32.gmra.mrb[0].mxu0 %v395
  %v474 = vpop.f32.mrb[0].mxu0
  %v475 = vadd.f32 %v378, %v474
  %v476 = vpop.f32.mrb[0].mxu0
  %477 = vmatprep.mubr.f32.mxu0 0.0
  %478 = vmatmul.mubr.f32.gmra.mrb[0].mxu0 %v398
  %v479 = vpop.f32.mrb[0].mxu0
  %v480 = vadd.f32 %v383, %v479
  %v481 = vpop.f32.mrb[0].mxu0
  %482 = vmatprep.mubr.f32.mxu0 0.0
  %483 = vmatmul.mubr.f32.gmra.mrb[0].mxu0 %v401
  %v484 = vpop.f32.mrb[0].mxu0
  %v485 = vadd.f32 %v388, %v484
  %v486 = vpop.f32.mrb[0].mxu0
  %487 = vdwg.mxu0
  %v488 = vld [vmem:[%s3 + $0x40] sm:$0xff]
  %v489 = vld [vmem:[%s3 + $0x48] sm:$0xff]
  %v490 = vld [vmem:[%s3 + $0x50] sm:$0xff]
  %v491 = vld [vmem:[%s3 + $0x58] sm:$0xff]
  %v493 = vsel %vm293, %v277, 0
  %v496 = vsel %vm293, %v278, 0
  %v499 = vsel %vm293, %v279, 0
  %v502 = vsel %vm293, %v280, 0
  %504 = vmatprep.subr.mxu0 0.0
  %505 = vmatpush1.msra.mxu0 %v488
  %506 = vmatprep.subr.mxu0 0.0
  %507 = vmatpush1.msra.mxu0 %v489
  %508 = vmatprep.subr.mxu0 0.0
  %509 = vmatpush1.msra.mxu0 %v490
  %510 = vmatprep.subr.mxu0 0.0
  %511 = vmatpush1.msra.mxu0 %v491
  %512 = vmatprep.subr.mxu0 0.0
  %513 = vmatpush1.msra.mxu0 0.0
  %514 = vmatprep.subr.mxu0 0.0
  %515 = vmatpush1.msra.mxu0 0.0
  %516 = vmatprep.subr.mxu0 0.0
  %517 = vmatpush1.msra.mxu0 0.0
  %518 = vmatprep.subr.mxu0 0.0
  %519 = vmatpush1.msra.mxu0 0.0
  %520 = vmatprep.subr.mxu0 0.0
  %521 = vmatpush1.msra.mxu0 0.0
  %522 = vmatprep.subr.mxu0 0.0
  %523 = vmatpush1.msra.mxu0 0.0
  %524 = vmatprep.subr.mxu0 0.0
  %525 = vmatpush1.msra.mxu0 0.0
  %526 = vmatprep.subr.mxu0 0.0
  %527 = vmatpush1.msra.mxu0 0.0
  %528 = vmatprep.subr.mxu0 0.0
  %529 = vmatpush1.msra.mxu0 0.0
  %530 = vmatprep.subr.mxu0 0.0
  %531 = vmatpush1.msra.mxu0 0.0
  %532 = vmatprep.subr.mxu0 0.0
  %533 = vmatpush1.msra.mxu0 0.0
  %534 = vmatprep.subr.mxu0 0.0
  %535 = vmatpush1.msra.mxu0 0.0
  %536 = vmatprep.subr.mxu0 0.0
  %537 = vmatpush1.msra.mxu0 0.0
  %538 = vmatprep.subr.mxu0 0.0
  %539 = vmatpush1.msra.mxu0 0.0
  %540 = vmatprep.subr.mxu0 0.0
  %541 = vmatpush1.msra.mxu0 0.0
  %542 = vmatprep.subr.mxu0 0.0
  %543 = vmatpush1.msra.mxu0 0.0
  %544 = vmatprep.subr.mxu0 0.0
  %545 = vmatpush1.msra.mxu0 0.0
  %546 = vmatprep.subr.mxu0 0.0
  %547 = vmatpush1.msra.mxu0 0.0
  %548 = vmatprep.subr.mxu0 0.0
  %549 = vmatpush1.msra.mxu0 0.0
  %550 = vmatprep.subr.mxu0 0.0
  %551 = vmatpush1.msra.mxu0 0.0
  %552 = vmatprep.subr.mxu0 0.0
  %553 = vmatpush1.msra.mxu0 0.0
  %554 = vmatprep.subr.mxu0 0.0
  %555 = vmatpush1.msra.mxu0 0.0
  %556 = vmatprep.subr.mxu0 0.0
  %557 = vmatpush1.msra.mxu0 0.0
  %558 = vmatprep.subr.mxu0 0.0
  %559 = vmatpush1.msra.mxu0 0.0
  %560 = vmatprep.subr.mxu0 0.0
  %561 = vmatpush1.msra.mxu0 0.0
  %562 = vmatprep.subr.mxu0 0.0
  %563 = vmatpush1.msra.mxu0 0.0
  %564 = vmatprep.subr.mxu0 0.0
  %565 = vmatpush1.msra.mxu0 0.0
  %566 = vmatprep.subr.mxu0 0.0
  %567 = vmatpush1.msra.mxu0 0.0
  %568 = vmatprep.mubr.f32.mxu0 0.0
  %569 = vmatmul.mubr.f32.gmra.mrb[0].mxu0 %v493
  %v570 = vpop.f32.mrb[0].mxu0
  %v571 = vadd.f32 0.0, %v570
  %v572 = vpop.f32.mrb[0].mxu0
  %573 = vmatprep.mubr.f32.mxu0 0.0
  %574 = vmatmul.mubr.f32.gmra.mrb[0].mxu0 %v496
  %v575 = vpop.f32.mrb[0].mxu0
  %v576 = vadd.f32 0.0, %v575
  %v577 = vpop.f32.mrb[0].mxu0
  %578 = vmatprep.mubr.f32.mxu0 0.0
  %579 = vmatmul.mubr.f32.gmra.mrb[0].mxu0 %v499
  %v580 = vpop.f32.mrb[0].mxu0
  %v581 = vadd.f32 0.0, %v580
  %v582 = vpop.f32.mrb[0].mxu0
  %583 = vmatprep.mubr.f32.mxu0 0.0
  %584 = vmatmul.mubr.f32.gmra.mrb[0].mxu0 %v502
  %v585 = vpop.f32.mrb[0].mxu0
  %v586 = vadd.f32 0.0, %v585
  %v587 = vpop.f32.mrb[0].mxu0
  %588 = vdwg.mxu0
  %v589 = vadd.f32 %v470, %v571
  %v590 = vadd.f32 %v475, %v576
  %v591 = vadd.f32 %v480, %v581
  %v592 = vadd.f32 %v485, %v586
  %v593 = vld [vmem:[%s3 + $0x60] sm:$0xff]
  %v594 = vld [vmem:[%s3 + $0x68] sm:$0xff]
  %v595 = vld [vmem:[%s3 + $0x70] sm:$0xff]
  %v596 = vld [vmem:[%s3 + $0x78] sm:$0xff]
  %v598 = vsel %vm293, %v281, 0
  %v601 = vsel %vm293, %v282, 0
  %v604 = vsel %vm293, %v283, 0
  %v607 = vsel %vm293, %v284, 0
  %609 = vmatprep.subr.mxu0 0.0
  %610 = vmatpush1.msra.mxu0 %v593
  %611 = vmatprep.subr.mxu0 0.0
  %612 = vmatpush1.msra.mxu0 %v594
  %613 = vmatprep.subr.mxu0 0.0
  %614 = vmatpush1.msra.mxu0 %v595
  %615 = vmatprep.subr.mxu0 0.0
  %616 = vmatpush1.msra.mxu0 %v596
  %617 = vmatprep.subr.mxu0 0.0
  %618 = vmatpush1.msra.mxu0 0.0
  %619 = vmatprep.subr.mxu0 0.0
  %620 = vmatpush1.msra.mxu0 0.0
  %621 = vmatprep.subr.mxu0 0.0
  %622 = vmatpush1.msra.mxu0 0.0
  %623 = vmatprep.subr.mxu0 0.0
  %624 = vmatpush1.msra.mxu0 0.0
  %625 = vmatprep.subr.mxu0 0.0
  %626 = vmatpush1.msra.mxu0 0.0
  %627 = vmatprep.subr.mxu0 0.0
  %628 = vmatpush1.msra.mxu0 0.0
  %629 = vmatprep.subr.mxu0 0.0
  %630 = vmatpush1.msra.mxu0 0.0
  %631 = vmatprep.subr.mxu0 0.0
  %632 = vmatpush1.msra.mxu0 0.0
  %633 = vmatprep.subr.mxu0 0.0
  %634 = vmatpush1.msra.mxu0 0.0
  %635 = vmatprep.subr.mxu0 0.0
  %636 = vmatpush1.msra.mxu0 0.0
  %637 = vmatprep.subr.mxu0 0.0
  %638 = vmatpush1.msra.mxu0 0.0
  %639 = vmatprep.subr.mxu0 0.0
  %640 = vmatpush1.msra.mxu0 0.0
  %641 = vmatprep.subr.mxu0 0.0
  %642 = vmatpush1.msra.mxu0 0.0
  %643 = vmatprep.subr.mxu0 0.0
  %644 = vmatpush1.msra.mxu0 0.0
  %645 = vmatprep.subr.mxu0 0.0
  %646 = vmatpush1.msra.mxu0 0.0
  %647 = vmatprep.subr.mxu0 0.0
  %648 = vmatpush1.msra.mxu0 0.0
  %649 = vmatprep.subr.mxu0 0.0
  %650 = vmatpush1.msra.mxu0 0.0
  %651 = vmatprep.subr.mxu0 0.0
  %652 = vmatpush1.msra.mxu0 0.0
  %653 = vmatprep.subr.mxu0 0.0
  %654 = vmatpush1.msra.mxu0 0.0
  %655 = vmatprep.subr.mxu0 0.0
  %656 = vmatpush1.msra.mxu0 0.0
  %657 = vmatprep.subr.mxu0 0.0
  %658 = vmatpush1.msra.mxu0 0.0
  %659 = vmatprep.subr.mxu0 0.0
  %660 = vmatpush1.msra.mxu0 0.0
  %661 = vmatprep.subr.mxu0 0.0
  %662 = vmatpush1.msra.mxu0 0.0
  %663 = vmatprep.subr.mxu0 0.0
  %664 = vmatpush1.msra.mxu0 0.0
  %665 = vmatprep.subr.mxu0 0.0
  %666 = vmatpush1.msra.mxu0 0.0
  %667 = vmatprep.subr.mxu0 0.0
  %668 = vmatpush1.msra.mxu0 0.0
  %669 = vmatprep.subr.mxu0 0.0
  %670 = vmatpush1.msra.mxu0 0.0
  %671 = vmatprep.subr.mxu0 0.0
  %672 = vmatpush1.msra.mxu0 0.0
  %673 = vmatprep.mubr.f32.mxu0 0.0
  %674 = vmatmul.mubr.f32.gmra.mrb[0].mxu0 %v598
  %v675 = vpop.f32.mrb[0].mxu0
  %v676 = vadd.f32 0.0, %v675
  %v677 = vpop.f32.mrb[0].mxu0
  %678 = vmatprep.mubr.f32.mxu0 0.0
  %679 = vmatmul.mubr.f32.gmra.mrb[0].mxu0 %v601
  %v680 = vpop.f32.mrb[0].mxu0
  %v681 = vadd.f32 0.0, %v680
  %v682 = vpop.f32.mrb[0].mxu0
  %683 = vmatprep.mubr.f32.mxu0 0.0
  %684 = vmatmul.mubr.f32.gmra.mrb[0].mxu0 %v604
  %v685 = vpop.f32.mrb[0].mxu0
  %v686 = vadd.f32 0.0, %v685
  %v687 = vpop.f32.mrb[0].mxu0
  %688 = vmatprep.mubr.f32.mxu0 0.0
  %689 = vmatmul.mubr.f32.gmra.mrb[0].mxu0 %v607
  %v690 = vpop.f32.mrb[0].mxu0
  %v691 = vadd.f32 0.0, %v690
  %v692 = vpop.f32.mrb[0].mxu0
  %693 = vdwg.mxu0
  %v694 = vadd.f32 %v589, %v676
  %v695 = vadd.f32 %v590, %v681
  %v696 = vadd.f32 %v591, %v686
  %v697 = vadd.f32 %v592, %v691
  %v698 = vld [vmem:[%s4] sm:$0x1]
  %v700 = vlaneseq
  %v701 = vshrl.u32 %v700, 7
  %v702 = vsub.s32 0, %v701
  %v703 = vrot.slane %v698, %v702
  %v705 = vadd.f32 %v694, %v703
  %v706 = vadd.f32 %v695, %v703
  %v707 = vadd.f32 %v696, %v703
  %v708 = vadd.f32 %v697, %v703
  %v709 = vmax.f32 %v705, 0.0
  %v710 = vmax.f32 %v706, 0.0
  %v711 = vmax.f32 %v707, 0.0
  %v712 = vmax.f32 %v708, 0.0
  %v713 = vld [vmem:[%s5] sm:$0xff]
  %v714 = vld [vmem:[%s5 + $0x8] sm:$0xff]
  %v715 = vld [vmem:[%s5 + $0x10] sm:$0xff]
  %v716 = vld [vmem:[%s5 + $0x18] sm:$0xff]
  %v717 = vld [vmem:[%s5 + $0x20] sm:$0xff]
  %v718 = vld [vmem:[%s5 + $0x28] sm:$0xff]
  %v719 = vld [vmem:[%s5 + $0x30] sm:$0xff]
  %v720 = vld [vmem:[%s5 + $0x38] sm:$0xff]
  %v721 = vld [vmem:[%s5 + $0x40] sm:$0xff]
  %v722 = vld [vmem:[%s5 + $0x48] sm:$0xff]
  %v723 = vld [vmem:[%s5 + $0x50] sm:$0xff]
  %v724 = vld [vmem:[%s5 + $0x58] sm:$0xff]
  %v725 = vld [vmem:[%s5 + $0x60] sm:$0xff]
  %v726 = vld [vmem:[%s5 + $0x68] sm:$0xff]
  %v727 = vld [vmem:[%s5 + $0x70] sm:$0xff]
  %v728 = vld [vmem:[%s5 + $0x78] sm:$0xff]
  %v730 = vsel %vm75, %v710, 0
  %732 = vmatprep.subr.mxu0 0.0
  %733 = vmatpush1.msra.mxu0 %v721
  %734 = vmatprep.subr.mxu0 0.0
  %735 = vmatpush1.msra.mxu0 %v722
  %736 = vmatprep.subr.mxu0 0.0
  %737 = vmatpush1.msra.mxu0 %v723
  %738 = vmatprep.subr.mxu0 0.0
  %739 = vmatpush1.msra.mxu0 %v724
  %740 = vmatprep.subr.mxu0 0.0
  %741 = vmatpush1.msra.mxu0 %v725
  %742 = vmatprep.subr.mxu0 0.0
  %743 = vmatpush1.msra.mxu0 %v726
  %744 = vmatprep.subr.mxu0 0.0
  %745 = vmatpush1.msra.mxu0 %v727
  %746 = vmatprep.subr.mxu0 0.0
  %747 = vmatpush1.msra.mxu0 %v728
  %748 = vmatprep.subr.mxu0 0.0
  %749 = vmatpush1.msra.mxu0 0.0
  %750 = vmatprep.subr.mxu0 0.0
  %751 = vmatpush1.msra.mxu0 0.0
  %752 = vmatprep.subr.mxu0 0.0
  %753 = vmatpush1.msra.mxu0 0.0
  %754 = vmatprep.subr.mxu0 0.0
  %755 = vmatpush1.msra.mxu0 0.0
  %756 = vmatprep.subr.mxu0 0.0
  %757 = vmatpush1.msra.mxu0 0.0
  %758 = vmatprep.subr.mxu0 0.0
  %759 = vmatpush1.msra.mxu0 0.0
  %760 = vmatprep.subr.mxu0 0.0
  %761 = vmatpush1.msra.mxu0 0.0
  %762 = vmatprep.subr.mxu0 0.0
  %763 = vmatpush1.msra.mxu0 0.0
  %764 = vmatprep.subr.mxu0 0.0
  %765 = vmatpush1.msra.mxu0 0.0
  %766 = vmatprep.subr.mxu0 0.0
  %767 = vmatpush1.msra.mxu0 0.0
  %768 = vmatprep.subr.mxu0 0.0
  %769 = vmatpush1.msra.mxu0 0.0
  %770 = vmatprep.subr.mxu0 0.0
  %771 = vmatpush1.msra.mxu0 0.0
  %772 = vmatprep.subr.mxu0 0.0
  %773 = vmatpush1.msra.mxu0 0.0
  %774 = vmatprep.subr.mxu0 0.0
  %775 = vmatpush1.msra.mxu0 0.0
  %776 = vmatprep.subr.mxu0 0.0
  %777 = vmatpush1.msra.mxu0 0.0
  %778 = vmatprep.subr.mxu0 0.0
  %779 = vmatpush1.msra.mxu0 0.0
  %780 = vmatprep.subr.mxu0 0.0
  %781 = vmatpush1.msra.mxu0 0.0
  %782 = vmatprep.subr.mxu0 0.0
  %783 = vmatpush1.msra.mxu0 0.0
  %784 = vmatprep.subr.mxu0 0.0
  %785 = vmatpush1.msra.mxu0 0.0
  %786 = vmatprep.subr.mxu0 0.0
  %787 = vmatpush1.msra.mxu0 0.0
  %788 = vmatprep.subr.mxu0 0.0
  %789 = vmatpush1.msra.mxu0 0.0
  %790 = vmatprep.subr.mxu0 0.0
  %791 = vmatpush1.msra.mxu0 0.0
  %792 = vmatprep.subr.mxu0 0.0
  %793 = vmatpush1.msra.mxu0 0.0
  %794 = vmatprep.subr.mxu0 0.0
  %795 = vmatpush1.msra.mxu0 0.0
  %796 = vmatprep.mubr.f32.mxu0 0.0
  %797 = vmatmul.mubr.f32.gmra.mrb[0].mxu0 %v730
  %v798 = vpop.f32.mrb[0].mxu0
  %v799 = vadd.f32 0.0, %v798
  %v800 = vpop.f32.mrb[0].mxu0
  %801 = vdwg.mxu0
  %v803 = vsel %vm75, %v709, 0
  %805 = vmatprep.subr.mxu0 0.0
  %806 = vmatpush1.msra.mxu0 %v713
  %807 = vmatprep.subr.mxu0 0.0
  %808 = vmatpush1.msra.mxu0 %v714
  %809 = vmatprep.subr.mxu0 0.0
  %810 = vmatpush1.msra.mxu0 %v715
  %811 = vmatprep.subr.mxu0 0.0
  %812 = vmatpush1.msra.mxu0 %v716
  %813 = vmatprep.subr.mxu0 0.0
  %814 = vmatpush1.msra.mxu0 %v717
  %815 = vmatprep.subr.mxu0 0.0
  %816 = vmatpush1.msra.mxu0 %v718
  %817 = vmatprep.subr.mxu0 0.0
  %818 = vmatpush1.msra.mxu0 %v719
  %819 = vmatprep.subr.mxu0 0.0
  %820 = vmatpush1.msra.mxu0 %v720
  %821 = vmatprep.subr.mxu0 0.0
  %822 = vmatpush1.msra.mxu0 0.0
  %823 = vmatprep.subr.mxu0 0.0
  %824 = vmatpush1.msra.mxu0 0.0
  %825 = vmatprep.subr.mxu0 0.0
  %826 = vmatpush1.msra.mxu0 0.0
  %827 = vmatprep.subr.mxu0 0.0
  %828 = vmatpush1.msra.mxu0 0.0
  %829 = vmatprep.subr.mxu0 0.0
  %830 = vmatpush1.msra.mxu0 0.0
  %831 = vmatprep.subr.mxu0 0.0
  %832 = vmatpush1.msra.mxu0 0.0
  %833 = vmatprep.subr.mxu0 0.0
  %834 = vmatpush1.msra.mxu0 0.0
  %835 = vmatprep.subr.mxu0 0.0
  %836 = vmatpush1.msra.mxu0 0.0
  %837 = vmatprep.subr.mxu0 0.0
  %838 = vmatpush1.msra.mxu0 0.0
  %839 = vmatprep.subr.mxu0 0.0
  %840 = vmatpush1.msra.mxu0 0.0
  %841 = vmatprep.subr.mxu0 0.0
  %842 = vmatpush1.msra.mxu0 0.0
  %843 = vmatprep.subr.mxu0 0.0
  %844 = vmatpush1.msra.mxu0 0.0
  %845 = vmatprep.subr.mxu0 0.0
  %846 = vmatpush1.msra.mxu0 0.0
  %847 = vmatprep.subr.mxu0 0.0
  %848 = vmatpush1.msra.mxu0 0.0
  %849 = vmatprep.subr.mxu0 0.0
  %850 = vmatpush1.msra.mxu0 0.0
  %851 = vmatprep.subr.mxu0 0.0
  %852 = vmatpush1.msra.mxu0 0.0
  %853 = vmatprep.subr.mxu0 0.0
  %854 = vmatpush1.msra.mxu0 0.0
  %855 = vmatprep.subr.mxu0 0.0
  %856 = vmatpush1.msra.mxu0 0.0
  %857 = vmatprep.subr.mxu0 0.0
  %858 = vmatpush1.msra.mxu0 0.0
  %859 = vmatprep.subr.mxu0 0.0
  %860 = vmatpush1.msra.mxu0 0.0
  %861 = vmatprep.subr.mxu0 0.0
  %862 = vmatpush1.msra.mxu0 0.0
  %863 = vmatprep.subr.mxu0 0.0
  %864 = vmatpush1.msra.mxu0 0.0
  %865 = vmatprep.subr.mxu0 0.0
  %866 = vmatpush1.msra.mxu0 0.0
  %867 = vmatprep.subr.mxu0 0.0
  %868 = vmatpush1.msra.mxu0 0.0
  %869 = vmatprep.mubr.f32.mxu0 0.0
  %870 = vmatmul.mubr.f32.gmra.mrb[0].mxu0 %v803
  %v871 = vpop.f32.mrb[0].mxu0
  %v872 = vadd.f32 %v799, %v871
  %v873 = vpop.f32.mrb[0].mxu0
  %874 = vdwg.mxu0
  %v875 = vld [vmem:[%s5 + $0x80] sm:$0xff]
  %v876 = vld [vmem:[%s5 + $0x88] sm:$0xff]
  %v877 = vld [vmem:[%s5 + $0x90] sm:$0xff]
  %v878 = vld [vmem:[%s5 + $0x98] sm:$0xff]
  %v879 = vld [vmem:[%s5 + $0xa0] sm:$0xff]
  %v880 = vld [vmem:[%s5 + $0xa8] sm:$0xff]
  %v881 = vld [vmem:[%s5 + $0xb0] sm:$0xff]
  %v882 = vld [vmem:[%s5 + $0xb8] sm:$0xff]
  %v884 = vsel %vm75, %v711, 0
  %886 = vmatprep.subr.mxu0 0.0
  %887 = vmatpush1.msra.mxu0 %v875
  %888 = vmatprep.subr.mxu0 0.0
  %889 = vmatpush1.msra.mxu0 %v876
  %890 = vmatprep.subr.mxu0 0.0
  %891 = vmatpush1.msra.mxu0 %v877
  %892 = vmatprep.subr.mxu0 0.0
  %893 = vmatpush1.msra.mxu0 %v878
  %894 = vmatprep.subr.mxu0 0.0
  %895 = vmatpush1.msra.mxu0 %v879
  %896 = vmatprep.subr.mxu0 0.0
  %897 = vmatpush1.msra.mxu0 %v880
  %898 = vmatprep.subr.mxu0 0.0
  %899 = vmatpush1.msra.mxu0 %v881
  %900 = vmatprep.subr.mxu0 0.0
  %901 = vmatpush1.msra.mxu0 %v882
  %902 = vmatprep.subr.mxu0 0.0
  %903 = vmatpush1.msra.mxu0 0.0
  %904 = vmatprep.subr.mxu0 0.0
  %905 = vmatpush1.msra.mxu0 0.0
  %906 = vmatprep.subr.mxu0 0.0
  %907 = vmatpush1.msra.mxu0 0.0
  %908 = vmatprep.subr.mxu0 0.0
  %909 = vmatpush1.msra.mxu0 0.0
  %910 = vmatprep.subr.mxu0 0.0
  %911 = vmatpush1.msra.mxu0 0.0
  %912 = vmatprep.subr.mxu0 0.0
  %913 = vmatpush1.msra.mxu0 0.0
  %914 = vmatprep.subr.mxu0 0.0
  %915 = vmatpush1.msra.mxu0 0.0
  %916 = vmatprep.subr.mxu0 0.0
  %917 = vmatpush1.msra.mxu0 0.0
  %918 = vmatprep.subr.mxu0 0.0
  %919 = vmatpush1.msra.mxu0 0.0
  %920 = vmatprep.subr.mxu0 0.0
  %921 = vmatpush1.msra.mxu0 0.0
  %922 = vmatprep.subr.mxu0 0.0
  %923 = vmatpush1.msra.mxu0 0.0
  %924 = vmatprep.subr.mxu0 0.0
  %925 = vmatpush1.msra.mxu0 0.0
  %926 = vmatprep.subr.mxu0 0.0
  %927 = vmatpush1.msra.mxu0 0.0
  %928 = vmatprep.subr.mxu0 0.0
  %929 = vmatpush1.msra.mxu0 0.0
  %930 = vmatprep.subr.mxu0 0.0
  %931 = vmatpush1.msra.mxu0 0.0
  %932 = vmatprep.subr.mxu0 0.0
  %933 = vmatpush1.msra.mxu0 0.0
  %934 = vmatprep.subr.mxu0 0.0
  %935 = vmatpush1.msra.mxu0 0.0
  %936 = vmatprep.subr.mxu0 0.0
  %937 = vmatpush1.msra.mxu0 0.0
  %938 = vmatprep.subr.mxu0 0.0
  %939 = vmatpush1.msra.mxu0 0.0
  %940 = vmatprep.subr.mxu0 0.0
  %941 = vmatpush1.msra.mxu0 0.0
  %942 = vmatprep.subr.mxu0 0.0
  %943 = vmatpush1.msra.mxu0 0.0
  %944 = vmatprep.subr.mxu0 0.0
  %945 = vmatpush1.msra.mxu0 0.0
  %946 = vmatprep.subr.mxu0 0.0
  %947 = vmatpush1.msra.mxu0 0.0
  %948 = vmatprep.subr.mxu0 0.0
  %949 = vmatpush1.msra.mxu0 0.0
  %950 = vmatprep.mubr.f32.mxu0 0.0
  %951 = vmatmul.mubr.f32.gmra.mrb[0].mxu0 %v884
  %v952 = vpop.f32.mrb[0].mxu0
  %v953 = vadd.f32 0.0, %v952
  %v954 = vpop.f32.mrb[0].mxu0
  %955 = vdwg.mxu0
  %v956 = vadd.f32 %v872, %v953
  %v957 = vld [vmem:[%s5 + $0xc0] sm:$0xff]
  %v958 = vld [vmem:[%s5 + $0xc8] sm:$0xff]
  %v959 = vld [vmem:[%s5 + $0xd0] sm:$0xff]
  %v960 = vld [vmem:[%s5 + $0xd8] sm:$0xff]
  %v961 = vld [vmem:[%s5 + $0xe0] sm:$0xff]
  %v962 = vld [vmem:[%s5 + $0xe8] sm:$0xff]
  %v963 = vld [vmem:[%s5 + $0xf0] sm:$0xff]
  %v964 = vld [vmem:[%s5 + $0xf8] sm:$0xff]
  %v966 = vsel %vm75, %v712, 0
  %968 = vmatprep.subr.mxu0 0.0
  %969 = vmatpush1.msra.mxu0 %v957
  %970 = vmatprep.subr.mxu0 0.0
  %971 = vmatpush1.msra.mxu0 %v958
  %972 = vmatprep.subr.mxu0 0.0
  %973 = vmatpush1.msra.mxu0 %v959
  %974 = vmatprep.subr.mxu0 0.0
  %975 = vmatpush1.msra.mxu0 %v960
  %976 = vmatprep.subr.mxu0 0.0
  %977 = vmatpush1.msra.mxu0 %v961
  %978 = vmatprep.subr.mxu0 0.0
  %979 = vmatpush1.msra.mxu0 %v962
  %980 = vmatprep.subr.mxu0 0.0
  %981 = vmatpush1.msra.mxu0 %v963
  %982 = vmatprep.subr.mxu0 0.0
  %983 = vmatpush1.msra.mxu0 %v964
  %984 = vmatprep.subr.mxu0 0.0
  %985 = vmatpush1.msra.mxu0 0.0
  %986 = vmatprep.subr.mxu0 0.0
  %987 = vmatpush1.msra.mxu0 0.0
  %988 = vmatprep.subr.mxu0 0.0
  %989 = vmatpush1.msra.mxu0 0.0
  %990 = vmatprep.subr.mxu0 0.0
  %991 = vmatpush1.msra.mxu0 0.0
  %992 = vmatprep.subr.mxu0 0.0
  %993 = vmatpush1.msra.mxu0 0.0
  %994 = vmatprep.subr.mxu0 0.0
  %995 = vmatpush1.msra.mxu0 0.0
  %996 = vmatprep.subr.mxu0 0.0
  %997 = vmatpush1.msra.mxu0 0.0
  %998 = vmatprep.subr.mxu0 0.0
  %999 = vmatpush1.msra.mxu0 0.0
  %1000 = vmatprep.subr.mxu0 0.0
  %1001 = vmatpush1.msra.mxu0 0.0
  %1002 = vmatprep.subr.mxu0 0.0
  %1003 = vmatpush1.msra.mxu0 0.0
  %1004 = vmatprep.subr.mxu0 0.0
  %1005 = vmatpush1.msra.mxu0 0.0
  %1006 = vmatprep.subr.mxu0 0.0
  %1007 = vmatpush1.msra.mxu0 0.0
  %1008 = vmatprep.subr.mxu0 0.0
  %1009 = vmatpush1.msra.mxu0 0.0
  %1010 = vmatprep.subr.mxu0 0.0
  %1011 = vmatpush1.msra.mxu0 0.0
  %1012 = vmatprep.subr.mxu0 0.0
  %1013 = vmatpush1.msra.mxu0 0.0
  %1014 = vmatprep.subr.mxu0 0.0
  %1015 = vmatpush1.msra.mxu0 0.0
  %1016 = vmatprep.subr.mxu0 0.0
  %1017 = vmatpush1.msra.mxu0 0.0
  %1018 = vmatprep.subr.mxu0 0.0
  %1019 = vmatpush1.msra.mxu0 0.0
  %1020 = vmatprep.subr.mxu0 0.0
  %1021 = vmatpush1.msra.mxu0 0.0
  %1022 = vmatprep.subr.mxu0 0.0
  %1023 = vmatpush1.msra.mxu0 0.0
  %1024 = vmatprep.subr.mxu0 0.0
  %1025 = vmatpush1.msra.mxu0 0.0
  %1026 = vmatprep.subr.mxu0 0.0
  %1027 = vmatpush1.msra.mxu0 0.0
  %1028 = vmatprep.subr.mxu0 0.0
  %1029 = vmatpush1.msra.mxu0 0.0
  %1030 = vmatprep.subr.mxu0 0.0
  %1031 = vmatpush1.msra.mxu0 0.0
  %1032 = vmatprep.mubr.f32.mxu0 0.0
  %1033 = vmatmul.mubr.f32.gmra.mrb[0].mxu0 %v966
  %v1034 = vpop.f32.mrb[0].mxu0
  %v1035 = vadd.f32 0.0, %v1034
  %v1036 = vpop.f32.mrb[0].mxu0
  %1037 = vdwg.mxu0
  %v1038 = vadd.f32 %v956, %v1035
  %v1039 = vld [vmem:[%s6] sm:$0x1]
  %v1041 = vlaneseq
  %v1042 = vshrl.u32 %v1041, 7
  %v1043 = vsub.s32 0, %v1042
  %v1044 = vrot.slane %v1039, %v1043
  %v1046 = vadd.f32 %v1038, %v1044
  %v1048 = vrot.slane %v1046, 2
  %v1050 = vmax.f32 %v1046, %v1048
  %v1051 = vrot.slane %v1046, 4
  %v1053 = vmax.f32 %v1050, %v1051
  %v1054 = vrot.slane %v1046, 6
  %v1056 = vmax.f32 %v1053, %v1054
  %v1057 = vld [vmem:[%s7] sm:$0xff]
  %v1058 = vld [vmem:[%s7 + $0x8] sm:$0xff]
  %v1059 = vld [vmem:[%s7 + $0x10] sm:$0xff]
  %v1060 = vld [vmem:[%s7 + $0x18] sm:$0xff]
  %v1061 = vld [vmem:[%s7 + $0x20] sm:$0xff]
  %v1062 = vld [vmem:[%s7 + $0x28] sm:$0xff]
  %v1063 = vld [vmem:[%s7 + $0x30] sm:$0xff]
  %v1064 = vld [vmem:[%s7 + $0x38] sm:$0xff]
  %v1065 = vld [vmem:[%s7 + $0x40] sm:$0xff]
  %v1066 = vld [vmem:[%s7 + $0x48] sm:$0xff]
  %v1067 = vld [vmem:[%s7 + $0x50] sm:$0xff]
  %v1068 = vld [vmem:[%s7 + $0x58] sm:$0xff]
  %v1069 = vld [vmem:[%s7 + $0x60] sm:$0xff]
  %v1070 = vld [vmem:[%s7 + $0x68] sm:$0xff]
  %v1071 = vld [vmem:[%s7 + $0x70] sm:$0xff]
  %v1072 = vld [vmem:[%s7 + $0x78] sm:$0xff]
  %v1073 = vld [vmem:[%s7 + $0x80] sm:$0xff]
  %v1074 = vld [vmem:[%s7 + $0x88] sm:$0xff]
  %v1075 = vld [vmem:[%s7 + $0x90] sm:$0xff]
  %v1076 = vld [vmem:[%s7 + $0x98] sm:$0xff]
  %v1077 = vld [vmem:[%s7 + $0xa0] sm:$0xff]
  %v1078 = vld [vmem:[%s7 + $0xa8] sm:$0xff]
  %v1079 = vld [vmem:[%s7 + $0xb0] sm:$0xff]
  %v1080 = vld [vmem:[%s7 + $0xb8] sm:$0xff]
  %v1081 = vld [vmem:[%s7 + $0xc0] sm:$0xff]
  %v1082 = vld [vmem:[%s7 + $0xc8] sm:$0xff]
  %v1083 = vld [vmem:[%s7 + $0xd0] sm:$0xff]
  %v1084 = vld [vmem:[%s7 + $0xd8] sm:$0xff]
  %v1085 = vld [vmem:[%s7 + $0xe0] sm:$0xff]
  %v1086 = vld [vmem:[%s7 + $0xe8] sm:$0xff]
  %v1087 = vld [vmem:[%s7 + $0xf0] sm:$0xff]
  %v1088 = vld [vmem:[%s7 + $0xf8] sm:$0xff]
  %v1089 = vld [vmem:[%s8] sm:$0xf]
  %v1091 = vlaneseq
  %v1092 = vshrl.u32 %v1091, 7
  %v1093 = vsub.s32 0, %v1092
  %v1094 = vrot.slane %v1089, %v1093
  %v1095 = vlaneseq
  %v1096 = vshrl.u32 %v1095, 7
  %v1097 = vsub.s32 1, %v1096
  %v1098 = vrot.slane %v1089, %v1097
  %v1099 = vlaneseq
  %v1100 = vshrl.u32 %v1099, 7
  %v1101 = vsub.s32 2, %v1100
  %v1102 = vrot.slane %v1089, %v1101
  %v1103 = vlaneseq
  %v1104 = vshrl.u32 %v1103, 7
  %v1105 = vsub.s32 3, %v1104
  %v1106 = vrot.slane %v1089, %v1105
  %v1112 = vsel %vm75, %v1056, 0
  %1114 = vmatprep.subr.mxu0 %v1058
  %1115 = vmatpush1.msra.mxu0 %v1057
  %1116 = vmatprep.subr.mxu0 %v1062
  %1117 = vmatpush1.msra.mxu0 %v1061
  %1118 = vmatprep.subr.mxu0 %v1066
  %1119 = vmatpush1.msra.mxu0 %v1065
  %1120 = vmatprep.subr.mxu0 %v1070
  %1121 = vmatpush1.msra.mxu0 %v1069
  %1122 = vmatprep.subr.mxu0 %v1074
  %1123 = vmatpush1.msra.mxu0 %v1073
  %1124 = vmatprep.subr.mxu0 %v1078
  %1125 = vmatpush1.msra.mxu0 %v1077
  %1126 = vmatprep.subr.mxu0 %v1082
  %1127 = vmatpush1.msra.mxu0 %v1081
  %1128 = vmatprep.subr.mxu0 %v1086
  %1129 = vmatpush1.msra.mxu0 %v1085
  %1130 = vmatprep.subr.mxu0 0.0
  %1131 = vmatpush1.msra.mxu0 0.0
  %1132 = vmatprep.subr.mxu0 0.0
  %1133 = vmatpush1.msra.mxu0 0.0
  %1134 = vmatprep.subr.mxu0 0.0
  %1135 = vmatpush1.msra.mxu0 0.0
  %1136 = vmatprep.subr.mxu0 0.0
  %1137 = vmatpush1.msra.mxu0 0.0
  %1138 = vmatprep.subr.mxu0 0.0
  %1139 = vmatpush1.msra.mxu0 0.0
  %1140 = vmatprep.subr.mxu0 0.0
  %1141 = vmatpush1.msra.mxu0 0.0
  %1142 = vmatprep.subr.mxu0 0.0
  %1143 = vmatpush1.msra.mxu0 0.0
  %1144 = vmatprep.subr.mxu0 0.0
  %1145 = vmatpush1.msra.mxu0 0.0
  %1146 = vmatprep.subr.mxu0 0.0
  %1147 = vmatpush1.msra.mxu0 0.0
  %1148 = vmatprep.subr.mxu0 0.0
  %1149 = vmatpush1.msra.mxu0 0.0
  %1150 = vmatprep.subr.mxu0 0.0
  %1151 = vmatpush1.msra.mxu0 0.0
  %1152 = vmatprep.subr.mxu0 0.0
  %1153 = vmatpush1.msra.mxu0 0.0
  %1154 = vmatprep.subr.mxu0 0.0
  %1155 = vmatpush1.msra.mxu0 0.0
  %1156 = vmatprep.subr.mxu0 0.0
  %1157 = vmatpush1.msra.mxu0 0.0
  %1158 = vmatprep.subr.mxu0 0.0
  %1159 = vmatpush1.msra.mxu0 0.0
  %1160 = vmatprep.subr.mxu0 0.0
  %1161 = vmatpush1.msra.mxu0 0.0
  %1162 = vmatprep.subr.mxu0 0.0
  %1163 = vmatpush1.msra.mxu0 0.0
  %1164 = vmatprep.subr.mxu0 0.0
  %1165 = vmatpush1.msra.mxu0 0.0
  %1166 = vmatprep.subr.mxu0 0.0
  %1167 = vmatpush1.msra.mxu0 0.0
  %1168 = vmatprep.subr.mxu0 0.0
  %1169 = vmatpush1.msra.mxu0 0.0
  %1170 = vmatprep.subr.mxu0 0.0
  %1171 = vmatpush1.msra.mxu0 0.0
  %1172 = vmatprep.subr.mxu0 0.0
  %1173 = vmatpush1.msra.mxu0 0.0
  %1174 = vmatprep.subr.mxu0 0.0
  %1175 = vmatpush1.msra.mxu0 0.0
  %1176 = vmatprep.subr.mxu0 0.0
  %1177 = vmatpush1.msra.mxu0 0.0
  %1178 = vmatprep.mubr.f32.mxu0 0.0
  %1179 = vmatmul.mubr.f32.gmra.mrb[0].mxu0 %v1112
  %v1180 = vpop.f32.mrb[0].mxu0
  %v1181 = vadd.f32 %v1094, %v1180
  %v1182 = vpop.f32.mrb[0].mxu0
  %v1183 = vadd.f32 %v1098, %v1182
  %1184 = vdwg.mxu0
  %1185 = vmatprep.subr.mxu0 %v1060
  %1186 = vmatpush1.msra.mxu0 %v1059
  %1187 = vmatprep.subr.mxu0 %v1064
  %1188 = vmatpush1.msra.mxu0 %v1063
  %1189 = vmatprep.subr.mxu0 %v1068
  %1190 = vmatpush1.msra.mxu0 %v1067
  %1191 = vmatprep.subr.mxu0 %v1072
  %1192 = vmatpush1.msra.mxu0 %v1071
  %1193 = vmatprep.subr.mxu0 %v1076
  %1194 = vmatpush1.msra.mxu0 %v1075
  %1195 = vmatprep.subr.mxu0 %v1080
  %1196 = vmatpush1.msra.mxu0 %v1079
  %1197 = vmatprep.subr.mxu0 %v1084
  %1198 = vmatpush1.msra.mxu0 %v1083
  %1199 = vmatprep.subr.mxu0 %v1088
  %1200 = vmatpush1.msra.mxu0 %v1087
  %1201 = vmatprep.subr.mxu0 0.0
  %1202 = vmatpush1.msra.mxu0 0.0
  %1203 = vmatprep.subr.mxu0 0.0
  %1204 = vmatpush1.msra.mxu0 0.0
  %1205 = vmatprep.subr.mxu0 0.0
  %1206 = vmatpush1.msra.mxu0 0.0
  %1207 = vmatprep.subr.mxu0 0.0
  %1208 = vmatpush1.msra.mxu0 0.0
  %1209 = vmatprep.subr.mxu0 0.0
  %1210 = vmatpush1.msra.mxu0 0.0
  %1211 = vmatprep.subr.mxu0 0.0
  %1212 = vmatpush1.msra.mxu0 0.0
  %1213 = vmatprep.subr.mxu0 0.0
  %1214 = vmatpush1.msra.mxu0 0.0
  %1215 = vmatprep.subr.mxu0 0.0
  %1216 = vmatpush1.msra.mxu0 0.0
  %1217 = vmatprep.subr.mxu0 0.0
  %1218 = vmatpush1.msra.mxu0 0.0
  %1219 = vmatprep.subr.mxu0 0.0
  %1220 = vmatpush1.msra.mxu0 0.0
  %1221 = vmatprep.subr.mxu0 0.0
  %1222 = vmatpush1.msra.mxu0 0.0
  %1223 = vmatprep.subr.mxu0 0.0
  %1224 = vmatpush1.msra.mxu0 0.0
  %1225 = vmatprep.subr.mxu0 0.0
  %1226 = vmatpush1.msra.mxu0 0.0
  %1227 = vmatprep.subr.mxu0 0.0
  %1228 = vmatpush1.msra.mxu0 0.0
  %1229 = vmatprep.subr.mxu0 0.0
  %1230 = vmatpush1.msra.mxu0 0.0
  %1231 = vmatprep.subr.mxu0 0.0
  %1232 = vmatpush1.msra.mxu0 0.0
  %1233 = vmatprep.subr.mxu0 0.0
  %1234 = vmatpush1.msra.mxu0 0.0
  %1235 = vmatprep.subr.mxu0 0.0
  %1236 = vmatpush1.msra.mxu0 0.0
  %1237 = vmatprep.subr.mxu0 0.0
  %1238 = vmatpush1.msra.mxu0 0.0
  %1239 = vmatprep.subr.mxu0 0.0
  %1240 = vmatpush1.msra.mxu0 0.0
  %1241 = vmatprep.subr.mxu0 0.0
  %1242 = vmatpush1.msra.mxu0 0.0
  %1243 = vmatprep.subr.mxu0 0.0
  %1244 = vmatpush1.msra.mxu0 0.0
  %1245 = vmatprep.subr.mxu0 0.0
  %1246 = vmatpush1.msra.mxu0 0.0
  %1247 = vmatprep.subr.mxu0 0.0
  %1248 = vmatpush1.msra.mxu0 0.0
  %1249 = vmatprep.mubr.f32.mxu0 0.0
  %1250 = vmatmul.mubr.f32.gmra.mrb[0].mxu0 %v1112
  %v1251 = vpop.f32.mrb[0].mxu0
  %v1252 = vadd.f32 %v1102, %v1251
  %v1253 = vpop.f32.mrb[0].mxu0
  %v1254 = vadd.f32 %v1106, %v1253
  %1255 = vdwg.mxu0
  %v1256 = vmax.f32 %v1181, 0.0
  %v1257 = vmax.f32 %v1183, 0.0
  %v1258 = vmax.f32 %v1252, 0.0
  %v1259 = vmax.f32 %v1254, 0.0
  %v1260 = vld [vmem:[%s9] sm:$0xff]
  %v1261 = vld [vmem:[%s9 + $0x8] sm:$0xff]
  %v1262 = vld [vmem:[%s9 + $0x10] sm:$0xff]
  %v1263 = vld [vmem:[%s9 + $0x18] sm:$0xff]
  %v1264 = vld [vmem:[%s9 + $0x20] sm:$0xff]
  %v1265 = vld [vmem:[%s9 + $0x28] sm:$0xff]
  %v1266 = vld [vmem:[%s9 + $0x30] sm:$0xff]
  %v1267 = vld [vmem:[%s9 + $0x38] sm:$0xff]
  %v1268 = vld [vmem:[%s9 + $0x40] sm:$0xff]
  %v1269 = vld [vmem:[%s9 + $0x48] sm:$0xff]
  %v1270 = vld [vmem:[%s9 + $0x50] sm:$0xff]
  %v1271 = vld [vmem:[%s9 + $0x58] sm:$0xff]
  %v1272 = vld [vmem:[%s9 + $0x60] sm:$0xff]
  %v1273 = vld [vmem:[%s9 + $0x68] sm:$0xff]
  %v1274 = vld [vmem:[%s9 + $0x70] sm:$0xff]
  %v1275 = vld [vmem:[%s9 + $0x78] sm:$0xff]
  %v1276 = vld [vmem:[%s9 + $0x80] sm:$0xff]
  %v1277 = vld [vmem:[%s9 + $0x88] sm:$0xff]
  %v1278 = vld [vmem:[%s9 + $0x90] sm:$0xff]
  %v1279 = vld [vmem:[%s9 + $0x98] sm:$0xff]
  %v1280 = vld [vmem:[%s9 + $0xa0] sm:$0xff]
  %v1281 = vld [vmem:[%s9 + $0xa8] sm:$0xff]
  %v1282 = vld [vmem:[%s9 + $0xb0] sm:$0xff]
  %v1283 = vld [vmem:[%s9 + $0xb8] sm:$0xff]
  %v1284 = vld [vmem:[%s9 + $0xc0] sm:$0xff]
  %v1285 = vld [vmem:[%s9 + $0xc8] sm:$0xff]
  %v1286 = vld [vmem:[%s9 + $0xd0] sm:$0xff]
  %v1287 = vld [vmem:[%s9 + $0xd8] sm:$0xff]
  %v1288 = vld [vmem:[%s9 + $0xe0] sm:$0xff]
  %v1289 = vld [vmem:[%s9 + $0xe8] sm:$0xff]
  %v1290 = vld [vmem:[%s9 + $0xf0] sm:$0xff]
  %v1291 = vld [vmem:[%s9 + $0xf8] sm:$0xff]
  %v1292 = vld [vmem:[%s9 + $0x100] sm:$0xff]
  %v1293 = vld [vmem:[%s9 + $0x108] sm:$0xff]
  %v1294 = vld [vmem:[%s9 + $0x110] sm:$0xff]
  %v1295 = vld [vmem:[%s9 + $0x118] sm:$0xff]
  %v1296 = vld [vmem:[%s9 + $0x120] sm:$0xff]
  %v1297 = vld [vmem:[%s9 + $0x128] sm:$0xff]
  %v1298 = vld [vmem:[%s9 + $0x130] sm:$0xff]
  %v1299 = vld [vmem:[%s9 + $0x138] sm:$0xff]
  %v1300 = vld [vmem:[%s9 + $0x140] sm:$0xff]
  %v1301 = vld [vmem:[%s9 + $0x148] sm:$0xff]
  %v1302 = vld [vmem:[%s9 + $0x150] sm:$0xff]
  %v1303 = vld [vmem:[%s9 + $0x158] sm:$0xff]
  %v1304 = vld [vmem:[%s9 + $0x160] sm:$0xff]
  %v1305 = vld [vmem:[%s9 + $0x168] sm:$0xff]
  %v1306 = vld [vmem:[%s9 + $0x170] sm:$0xff]
  %v1307 = vld [vmem:[%s9 + $0x178] sm:$0xff]
  %v1308 = vld [vmem:[%s9 + $0x180] sm:$0xff]
  %v1309 = vld [vmem:[%s9 + $0x188] sm:$0xff]
  %v1310 = vld [vmem:[%s9 + $0x190] sm:$0xff]
  %v1311 = vld [vmem:[%s9 + $0x198] sm:$0xff]
  %v1312 = vld [vmem:[%s9 + $0x1a0] sm:$0xff]
  %v1313 = vld [vmem:[%s9 + $0x1a8] sm:$0xff]
  %v1314 = vld [vmem:[%s9 + $0x1b0] sm:$0xff]
  %v1315 = vld [vmem:[%s9 + $0x1b8] sm:$0xff]
  %v1316 = vld [vmem:[%s9 + $0x1c0] sm:$0xff]
  %v1317 = vld [vmem:[%s9 + $0x1c8] sm:$0xff]
  %v1318 = vld [vmem:[%s9 + $0x1d0] sm:$0xff]
  %v1319 = vld [vmem:[%s9 + $0x1d8] sm:$0xff]
  %v1320 = vld [vmem:[%s9 + $0x1e0] sm:$0xff]
  %v1321 = vld [vmem:[%s9 + $0x1e8] sm:$0xff]
  %v1322 = vld [vmem:[%s9 + $0x1f0] sm:$0xff]
  %v1323 = vld [vmem:[%s9 + $0x1f8] sm:$0xff]
  %v1324 = vld [vmem:[%s9 + $0x200] sm:$0xff]
  %v1325 = vld [vmem:[%s9 + $0x208] sm:$0xff]
  %v1326 = vld [vmem:[%s9 + $0x210] sm:$0xff]
  %v1327 = vld [vmem:[%s9 + $0x218] sm:$0xff]
  %v1328 = vld [vmem:[%s9 + $0x220] sm:$0xff]
  %v1329 = vld [vmem:[%s9 + $0x228] sm:$0xff]
  %v1330 = vld [vmem:[%s9 + $0x230] sm:$0xff]
  %v1331 = vld [vmem:[%s9 + $0x238] sm:$0xff]
  %v1332 = vld [vmem:[%s9 + $0x240] sm:$0xff]
  %v1333 = vld [vmem:[%s9 + $0x248] sm:$0xff]
  %v1334 = vld [vmem:[%s9 + $0x250] sm:$0xff]
  %v1335 = vld [vmem:[%s9 + $0x258] sm:$0xff]
  %v1336 = vld [vmem:[%s9 + $0x260] sm:$0xff]
  %v1337 = vld [vmem:[%s9 + $0x268] sm:$0xff]
  %v1338 = vld [vmem:[%s9 + $0x270] sm:$0xff]
  %v1339 = vld [vmem:[%s9 + $0x278] sm:$0xff]
  %v1340 = vld [vmem:[%s9 + $0x280] sm:$0xff]
  %v1341 = vld [vmem:[%s9 + $0x288] sm:$0xff]
  %v1342 = vld [vmem:[%s9 + $0x290] sm:$0xff]
  %v1343 = vld [vmem:[%s9 + $0x298] sm:$0xff]
  %v1344 = vld [vmem:[%s9 + $0x2a0] sm:$0xff]
  %v1345 = vld [vmem:[%s9 + $0x2a8] sm:$0xff]
  %v1346 = vld [vmem:[%s9 + $0x2b0] sm:$0xff]
  %v1347 = vld [vmem:[%s9 + $0x2b8] sm:$0xff]
  %v1348 = vld [vmem:[%s9 + $0x2c0] sm:$0xff]
  %v1349 = vld [vmem:[%s9 + $0x2c8] sm:$0xff]
  %v1350 = vld [vmem:[%s9 + $0x2d0] sm:$0xff]
  %v1351 = vld [vmem:[%s9 + $0x2d8] sm:$0xff]
  %v1352 = vld [vmem:[%s9 + $0x2e0] sm:$0xff]
  %v1353 = vld [vmem:[%s9 + $0x2e8] sm:$0xff]
  %v1354 = vld [vmem:[%s9 + $0x2f0] sm:$0xff]
  %v1355 = vld [vmem:[%s9 + $0x2f8] sm:$0xff]
  %v1356 = vld [vmem:[%s9 + $0x300] sm:$0xff]
  %v1357 = vld [vmem:[%s9 + $0x308] sm:$0xff]
  %v1358 = vld [vmem:[%s9 + $0x310] sm:$0xff]
  %v1359 = vld [vmem:[%s9 + $0x318] sm:$0xff]
  %v1360 = vld [vmem:[%s9 + $0x320] sm:$0xff]
  %v1361 = vld [vmem:[%s9 + $0x328] sm:$0xff]
  %v1362 = vld [vmem:[%s9 + $0x330] sm:$0xff]
  %v1363 = vld [vmem:[%s9 + $0x338] sm:$0xff]
  %v1364 = vld [vmem:[%s9 + $0x340] sm:$0xff]
  %v1365 = vld [vmem:[%s9 + $0x348] sm:$0xff]
  %v1366 = vld [vmem:[%s9 + $0x350] sm:$0xff]
  %v1367 = vld [vmem:[%s9 + $0x358] sm:$0xff]
  %v1368 = vld [vmem:[%s9 + $0x360] sm:$0xff]
  %v1369 = vld [vmem:[%s9 + $0x368] sm:$0xff]
  %v1370 = vld [vmem:[%s9 + $0x370] sm:$0xff]
  %v1371 = vld [vmem:[%s9 + $0x378] sm:$0xff]
  %v1372 = vld [vmem:[%s9 + $0x380] sm:$0xff]
  %v1373 = vld [vmem:[%s9 + $0x388] sm:$0xff]
  %v1374 = vld [vmem:[%s9 + $0x390] sm:$0xff]
  %v1375 = vld [vmem:[%s9 + $0x398] sm:$0xff]
  %v1376 = vld [vmem:[%s9 + $0x3a0] sm:$0xff]
  %v1377 = vld [vmem:[%s9 + $0x3a8] sm:$0xff]
  %v1378 = vld [vmem:[%s9 + $0x3b0] sm:$0xff]
  %v1379 = vld [vmem:[%s9 + $0x3b8] sm:$0xff]
  %v1380 = vld [vmem:[%s9 + $0x3c0] sm:$0xff]
  %v1381 = vld [vmem:[%s9 + $0x3c8] sm:$0xff]
  %v1382 = vld [vmem:[%s9 + $0x3d0] sm:$0xff]
  %v1383 = vld [vmem:[%s9 + $0x3d8] sm:$0xff]
  %v1384 = vld [vmem:[%s9 + $0x3e0] sm:$0xff]
  %v1385 = vld [vmem:[%s9 + $0x3e8] sm:$0xff]
  %v1386 = vld [vmem:[%s9 + $0x3f0] sm:$0xff]
  %v1387 = vld [vmem:[%s9 + $0x3f8] sm:$0xff]
  %v1388 = vld [vmem:[%s10] sm:$0x3]
  %v1390 = vlaneseq
  %v1391 = vshrl.u32 %v1390, 7
  %v1392 = vsub.s32 0, %v1391
  %v1393 = vrot.slane %v1388, %v1392
  %v1394 = vlaneseq
  %v1395 = vshrl.u32 %v1394, 7
  %v1396 = vsub.s32 1, %v1395
  %v1397 = vrot.slane %v1388, %v1396
  %1400 = vmatprep.subr.mxu0 %v1261
  %1401 = vmatpush1.msra.mxu0 %v1260
  %1402 = vmatprep.subr.mxu0 %v1263
  %1403 = vmatpush1.msra.mxu0 %v1262
  %1404 = vmatprep.subr.mxu0 %v1265
  %1405 = vmatpush1.msra.mxu0 %v1264
  %1406 = vmatprep.subr.mxu0 %v1267
  %1407 = vmatpush1.msra.mxu0 %v1266
  %1408 = vmatprep.subr.mxu0 %v1269
  %1409 = vmatpush1.msra.mxu0 %v1268
  %1410 = vmatprep.subr.mxu0 %v1271
  %1411 = vmatpush1.msra.mxu0 %v1270
  %1412 = vmatprep.subr.mxu0 %v1273
  %1413 = vmatpush1.msra.mxu0 %v1272
  %1414 = vmatprep.subr.mxu0 %v1275
  %1415 = vmatpush1.msra.mxu0 %v1274
  %1416 = vmatprep.subr.mxu0 %v1277
  %1417 = vmatpush1.msra.mxu0 %v1276
  %1418 = vmatprep.subr.mxu0 %v1279
  %1419 = vmatpush1.msra.mxu0 %v1278
  %1420 = vmatprep.subr.mxu0 %v1281
  %1421 = vmatpush1.msra.mxu0 %v1280
  %1422 = vmatprep.subr.mxu0 %v1283
  %1423 = vmatpush1.msra.mxu0 %v1282
  %1424 = vmatprep.subr.mxu0 %v1285
  %1425 = vmatpush1.msra.mxu0 %v1284
  %1426 = vmatprep.subr.mxu0 %v1287
  %1427 = vmatpush1.msra.mxu0 %v1286
  %1428 = vmatprep.subr.mxu0 %v1289
  %1429 = vmatpush1.msra.mxu0 %v1288
  %1430 = vmatprep.subr.mxu0 %v1291
  %1431 = vmatpush1.msra.mxu0 %v1290
  %1432 = vmatprep.subr.mxu0 %v1293
  %1433 = vmatpush1.msra.mxu0 %v1292
  %1434 = vmatprep.subr.mxu0 %v1295
  %1435 = vmatpush1.msra.mxu0 %v1294
  %1436 = vmatprep.subr.mxu0 %v1297
  %1437 = vmatpush1.msra.mxu0 %v1296
  %1438 = vmatprep.subr.mxu0 %v1299
  %1439 = vmatpush1.msra.mxu0 %v1298
  %1440 = vmatprep.subr.mxu0 %v1301
  %1441 = vmatpush1.msra.mxu0 %v1300
  %1442 = vmatprep.subr.mxu0 %v1303
  %1443 = vmatpush1.msra.mxu0 %v1302
  %1444 = vmatprep.subr.mxu0 %v1305
  %1445 = vmatpush1.msra.mxu0 %v1304
  %1446 = vmatprep.subr.mxu0 %v1307
  %1447 = vmatpush1.msra.mxu0 %v1306
  %1448 = vmatprep.subr.mxu0 %v1309
  %1449 = vmatpush1.msra.mxu0 %v1308
  %1450 = vmatprep.subr.mxu0 %v1311
  %1451 = vmatpush1.msra.mxu0 %v1310
  %1452 = vmatprep.subr.mxu0 %v1313
  %1453 = vmatpush1.msra.mxu0 %v1312
  %1454 = vmatprep.subr.mxu0 %v1315
  %1455 = vmatpush1.msra.mxu0 %v1314
  %1456 = vmatprep.subr.mxu0 %v1317
  %1457 = vmatpush1.msra.mxu0 %v1316
  %1458 = vmatprep.subr.mxu0 %v1319
  %1459 = vmatpush1.msra.mxu0 %v1318
  %1460 = vmatprep.subr.mxu0 %v1321
  %1461 = vmatpush1.msra.mxu0 %v1320
  %1462 = vmatprep.subr.mxu0 %v1323
  %1463 = vmatpush1.msra.mxu0 %v1322
  %1464 = vmatprep.mubr.f32.mxu0 %v1257
  %1465 = vmatmul.mubr.f32.gmra.mrb[0].mxu0 %v1256
  %v1466 = vpop.f32.mrb[0].mxu0
  %v1467 = vadd.f32 %v1393, %v1466
  %v1468 = vpop.f32.mrb[0].mxu0
  %v1469 = vadd.f32 %v1397, %v1468
  %1470 = vdwg.mxu0
  %1471 = vmatprep.subr.mxu0 %v1325
  %1472 = vmatpush1.msra.mxu0 %v1324
  %1473 = vmatprep.subr.mxu0 %v1327
  %1474 = vmatpush1.msra.mxu0 %v1326
  %1475 = vmatprep.subr.mxu0 %v1329
  %1476 = vmatpush1.msra.mxu0 %v1328
  %1477 = vmatprep.subr.mxu0 %v1331
  %1478 = vmatpush1.msra.mxu0 %v1330
  %1479 = vmatprep.subr.mxu0 %v1333
  %1480 = vmatpush1.msra.mxu0 %v1332
  %1481 = vmatprep.subr.mxu0 %v1335
  %1482 = vmatpush1.msra.mxu0 %v1334
  %1483 = vmatprep.subr.mxu0 %v1337
  %1484 = vmatpush1.msra.mxu0 %v1336
  %1485 = vmatprep.subr.mxu0 %v1339
  %1486 = vmatpush1.msra.mxu0 %v1338
  %1487 = vmatprep.subr.mxu0 %v1341
  %1488 = vmatpush1.msra.mxu0 %v1340
  %1489 = vmatprep.subr.mxu0 %v1343
  %1490 = vmatpush1.msra.mxu0 %v1342
  %1491 = vmatprep.subr.mxu0 %v1345
  %1492 = vmatpush1.msra.mxu0 %v1344
  %1493 = vmatprep.subr.mxu0 %v1347
  %1494 = vmatpush1.msra.mxu0 %v1346
  %1495 = vmatprep.subr.mxu0 %v1349
  %1496 = vmatpush1.msra.mxu0 %v1348
  %1497 = vmatprep.subr.mxu0 %v1351
  %1498 = vmatpush1.msra.mxu0 %v1350
  %1499 = vmatprep.subr.mxu0 %v1353
  %1500 = vmatpush1.msra.mxu0 %v1352
  %1501 = vmatprep.subr.mxu0 %v1355
  %1502 = vmatpush1.msra.mxu0 %v1354
  %1503 = vmatprep.subr.mxu0 %v1357
  %1504 = vmatpush1.msra.mxu0 %v1356
  %1505 = vmatprep.subr.mxu0 %v1359
  %1506 = vmatpush1.msra.mxu0 %v1358
  %1507 = vmatprep.subr.mxu0 %v1361
  %1508 = vmatpush1.msra.mxu0 %v1360
  %1509 = vmatprep.subr.mxu0 %v1363
  %1510 = vmatpush1.msra.mxu0 %v1362
  %1511 = vmatprep.subr.mxu0 %v1365
  %1512 = vmatpush1.msra.mxu0 %v1364
  %1513 = vmatprep.subr.mxu0 %v1367
  %1514 = vmatpush1.msra.mxu0 %v1366
  %1515 = vmatprep.subr.mxu0 %v1369
  %1516 = vmatpush1.msra.mxu0 %v1368
  %1517 = vmatprep.subr.mxu0 %v1371
  %1518 = vmatpush1.msra.mxu0 %v1370
  %1519 = vmatprep.subr.mxu0 %v1373
  %1520 = vmatpush1.msra.mxu0 %v1372
  %1521 = vmatprep.subr.mxu0 %v1375
  %1522 = vmatpush1.msra.mxu0 %v1374
  %1523 = vmatprep.subr.mxu0 %v1377
  %1524 = vmatpush1.msra.mxu0 %v1376
  %1525 = vmatprep.subr.mxu0 %v1379
  %1526 = vmatpush1.msra.mxu0 %v1378
  %1527 = vmatprep.subr.mxu0 %v1381
  %1528 = vmatpush1.msra.mxu0 %v1380
  %1529 = vmatprep.subr.mxu0 %v1383
  %1530 = vmatpush1.msra.mxu0 %v1382
  %1531 = vmatprep.subr.mxu0 %v1385
  %1532 = vmatpush1.msra.mxu0 %v1384
  %1533 = vmatprep.subr.mxu0 %v1387
  %1534 = vmatpush1.msra.mxu0 %v1386
  %1535 = vmatprep.mubr.f32.mxu0 %v1259
  %1536 = vmatmul.mubr.f32.gmra.mrb[0].mxu0 %v1258
  %v1537 = vpop.f32.mrb[0].mxu0
  %v1538 = vadd.f32 %v1467, %v1537
  %v1539 = vpop.f32.mrb[0].mxu0
  %v1540 = vadd.f32 %v1469, %v1539
  %1541 = vdwg.mxu0
  %v1542 = vmax.f32 %v1538, 0.0
  %v1543 = vmax.f32 %v1540, 0.0
  %v1544 = vld [vmem:[%s11] sm:$0xff]
  %v1545 = vld [vmem:[%s11 + $0x8] sm:$0xff]
  %v1546 = vld [vmem:[%s11 + $0x10] sm:$0xff]
  %v1547 = vld [vmem:[%s11 + $0x18] sm:$0xff]
  %v1548 = vld [vmem:[%s11 + $0x20] sm:$0xff]
  %v1549 = vld [vmem:[%s11 + $0x28] sm:$0xff]
  %v1550 = vld [vmem:[%s11 + $0x30] sm:$0xff]
  %v1551 = vld [vmem:[%s11 + $0x38] sm:$0xff]
  %v1552 = vld [vmem:[%s11 + $0x40] sm:$0xff]
  %v1553 = vld [vmem:[%s11 + $0x48] sm:$0xff]
  %v1554 = vld [vmem:[%s11 + $0x50] sm:$0xff]
  %v1555 = vld [vmem:[%s11 + $0x58] sm:$0xff]
  %v1556 = vld [vmem:[%s11 + $0x60] sm:$0xff]
  %v1557 = vld [vmem:[%s11 + $0x68] sm:$0xff]
  %v1558 = vld [vmem:[%s11 + $0x70] sm:$0xff]
  %v1559 = vld [vmem:[%s11 + $0x78] sm:$0xff]
  %v1560 = vld [vmem:[%s11 + $0x80] sm:$0xff]
  %v1561 = vld [vmem:[%s11 + $0x88] sm:$0xff]
  %v1562 = vld [vmem:[%s11 + $0x90] sm:$0xff]
  %v1563 = vld [vmem:[%s11 + $0x98] sm:$0xff]
  %v1564 = vld [vmem:[%s11 + $0xa0] sm:$0xff]
  %v1565 = vld [vmem:[%s11 + $0xa8] sm:$0xff]
  %v1566 = vld [vmem:[%s11 + $0xb0] sm:$0xff]
  %v1567 = vld [vmem:[%s11 + $0xb8] sm:$0xff]
  %v1568 = vld [vmem:[%s11 + $0xc0] sm:$0xff]
  %v1569 = vld [vmem:[%s11 + $0xc8] sm:$0xff]
  %v1570 = vld [vmem:[%s11 + $0xd0] sm:$0xff]
  %v1571 = vld [vmem:[%s11 + $0xd8] sm:$0xff]
  %v1572 = vld [vmem:[%s11 + $0xe0] sm:$0xff]
  %v1573 = vld [vmem:[%s11 + $0xe8] sm:$0xff]
  %v1574 = vld [vmem:[%s11 + $0xf0] sm:$0xff]
  %v1575 = vld [vmem:[%s11 + $0xf8] sm:$0xff]
  %v1576 = vld [vmem:[%s12] sm:$0x1]
  %v1578 = vlaneseq
  %v1579 = vshrl.u32 %v1578, 7
  %v1580 = vsub.s32 0, %v1579
  %v1581 = vrot.slane %v1576, %v1580
  %1583 = vmatprep.subr.mxu0 0.0
  %1584 = vmatpush1.msra.mxu0 %v1544
  %1585 = vmatprep.subr.mxu0 0.0
  %1586 = vmatpush1.msra.mxu0 %v1545
  %1587 = vmatprep.subr.mxu0 0.0
  %1588 = vmatpush1.msra.mxu0 %v1546
  %1589 = vmatprep.subr.mxu0 0.0
  %1590 = vmatpush1.msra.mxu0 %v1547
  %1591 = vmatprep.subr.mxu0 0.0
  %1592 = vmatpush1.msra.mxu0 %v1548
  %1593 = vmatprep.subr.mxu0 0.0
  %1594 = vmatpush1.msra.mxu0 %v1549
  %1595 = vmatprep.subr.mxu0 0.0
  %1596 = vmatpush1.msra.mxu0 %v1550
  %1597 = vmatprep.subr.mxu0 0.0
  %1598 = vmatpush1.msra.mxu0 %v1551
  %1599 = vmatprep.subr.mxu0 0.0
  %1600 = vmatpush1.msra.mxu0 %v1552
  %1601 = vmatprep.subr.mxu0 0.0
  %1602 = vmatpush1.msra.mxu0 %v1553
  %1603 = vmatprep.subr.mxu0 0.0
  %1604 = vmatpush1.msra.mxu0 %v1554
  %1605 = vmatprep.subr.mxu0 0.0
  %1606 = vmatpush1.msra.mxu0 %v1555
  %1607 = vmatprep.subr.mxu0 0.0
  %1608 = vmatpush1.msra.mxu0 %v1556
  %1609 = vmatprep.subr.mxu0 0.0
  %1610 = vmatpush1.msra.mxu0 %v1557
  %1611 = vmatprep.subr.mxu0 0.0
  %1612 = vmatpush1.msra.mxu0 %v1558
  %1613 = vmatprep.subr.mxu0 0.0
  %1614 = vmatpush1.msra.mxu0 %v1559
  %1615 = vmatprep.subr.mxu0 0.0
  %1616 = vmatpush1.msra.mxu0 %v1560
  %1617 = vmatprep.subr.mxu0 0.0
  %1618 = vmatpush1.msra.mxu0 %v1561
  %1619 = vmatprep.subr.mxu0 0.0
  %1620 = vmatpush1.msra.mxu0 %v1562
  %1621 = vmatprep.subr.mxu0 0.0
  %1622 = vmatpush1.msra.mxu0 %v1563
  %1623 = vmatprep.subr.mxu0 0.0
  %1624 = vmatpush1.msra.mxu0 %v1564
  %1625 = vmatprep.subr.mxu0 0.0
  %1626 = vmatpush1.msra.mxu0 %v1565
  %1627 = vmatprep.subr.mxu0 0.0
  %1628 = vmatpush1.msra.mxu0 %v1566
  %1629 = vmatprep.subr.mxu0 0.0
  %1630 = vmatpush1.msra.mxu0 %v1567
  %1631 = vmatprep.subr.mxu0 0.0
  %1632 = vmatpush1.msra.mxu0 %v1568
  %1633 = vmatprep.subr.mxu0 0.0
  %1634 = vmatpush1.msra.mxu0 %v1569
  %1635 = vmatprep.subr.mxu0 0.0
  %1636 = vmatpush1.msra.mxu0 %v1570
  %1637 = vmatprep.subr.mxu0 0.0
  %1638 = vmatpush1.msra.mxu0 %v1571
  %1639 = vmatprep.subr.mxu0 0.0
  %1640 = vmatpush1.msra.mxu0 %v1572
  %1641 = vmatprep.subr.mxu0 0.0
  %1642 = vmatpush1.msra.mxu0 %v1573
  %1643 = vmatprep.subr.mxu0 0.0
  %1644 = vmatpush1.msra.mxu0 %v1574
  %1645 = vmatprep.subr.mxu0 0.0
  %1646 = vmatpush1.msra.mxu0 %v1575
  %1647 = vmatprep.mubr.f32.mxu0 %v1543
  %1648 = vmatmul.mubr.f32.gmra.mrb[0].mxu0 %v1542
  %v1649 = vpop.f32.mrb[0].mxu0
  %v1650 = vadd.f32 %v1581, %v1649
  %v1651 = vpop.f32.mrb[0].mxu0
  %1652 = vdwg.mxu0
  %1653 = vst [vmem:[%s13] sm:$0x3] %v1650
  // Predicated region
  $region54: #{ddqn_forward.1} parent=0 // pred_check
    _
  $region55: #{ddqn_forward.1} parent=0 // pred_check_branch
    %1655 = sbr.rel (0) target = $region57
  $region56: #{ddqn_forward.1} parent=0 // pred_region
    _
  $region57: #{ddqn_forward.1} parent=0 // pred_fallthru
    _
  // Predicated region
  $region58: #{ddqn_forward.1} parent=0 // pred_check
    _
  $region59: #{ddqn_forward.1} parent=0 // pred_check_branch
    %1657 = sbr.rel (0) target = $region61
  $region60: #{ddqn_forward.1} parent=0 // pred_region
    _
  $region61: #{ddqn_forward.1} parent=0 // pred_fallthru
    _

</llo_original>
